<compile_context>
chip_gen: v7x
topology: tpu7x:2x2x1
jax: 0.10.0
libtpu: 0.0.40
codegen_flags: <defaults>
</compile_context>

<pallas_src>
import jax
import jax.numpy as jnp
from jax import lax
from jax.experimental import pallas as pl
from jax.experimental.pallas import tpu as pltpu

INP_DIM = 21
HIDDEN = 128
ACTION_SIZE = 28
PAD = 128           # lane-padded feature width
MAX_TB = 512        # max batch-tile rows (sweep 512/1024 per perf review)
SPLIT_ABOVE = 256   # force >= 2 grid steps above this so both v7x TCs engage


def _hexapawn_kernel(x_ref,
                     w1_ref, b1_ref, w2_ref, b2_ref, w3_ref, b3_ref,
                     w4_ref, b4_ref, wh_ref, bh_ref, out_ref):
    bf16 = jnp.bfloat16
    f32 = jnp.float32
    layers = ((w1_ref, b1_ref), (w2_ref, b2_ref),
              (w3_ref, b3_ref), (w4_ref, b4_ref))

    def chain(h):
        # Four relu(Linear): bf16 MXU matmuls, f32 accumulate/bias/relu.
        for w_ref, b_ref in layers:
            h = jnp.maximum(
                jnp.dot(h, w_ref[...], preferred_element_type=f32)
                + b_ref[...], 0.0).astype(bf16)
        # Fused head: lanes 0..27 = fc5 policy logits, lane 28 = raw fc6.
        return jnp.dot(h, wh_ref[...], preferred_element_type=f32) + bh_ref[...]

    def finish(head):
        col = lax.broadcasted_iota(jnp.int32, head.shape, 1)
        is_pi = col < ACTION_SIZE
        # Masked log_softmax over the 28 policy lanes; exp() of the -1e30
        # sentinel underflows to exactly 0, so no extra select is needed.
        masked = jnp.where(is_pi, head, jnp.float32(-1e30))
        m = jnp.max(masked, axis=1, keepdims=True)
        shifted = masked - m
        denom = jnp.sum(jnp.exp(shifted), axis=1, keepdims=True)
        logp = shifted - jnp.log(denom)
        # Lane-dense layout: [log_pi(0:28) | raw value logit(28) | zeros].
        # tanh is applied to the (B,1) slice in the wrapper, NOT here.
        return jnp.where(is_pi, logp,
                         jnp.where(col == ACTION_SIZE, head, 0.0))

    # tb is a multiple of 16, so both halves stay 8-sublane aligned.  The two
    # chains are independent, giving the scheduler MXU/VPU work to co-issue.
    half = x_ref.shape[0] // 2
    out_ref[:half, :] = finish(chain(x_ref[:half, :]))
    out_ref[half:, :] = finish(chain(x_ref[half:, :]))


def _round_up(n, m):
    return -(-n // m) * m


@jax.jit
def hexapawn_forward(x, params):
    """x: (B, 21) float. Returns (log_pi (B, 28) f32, v (B, 1) f32)."""
    b = x.shape[0]

    # Balanced tiles: minimal batch padding; >= 2 tiles above SPLIT_ABOVE so
    # both v7x TensorCores get a tile; tb multiple of 16 for the half-split.
    num_tiles = -(-b // MAX_TB)
    if num_tiles == 1 and b > SPLIT_ABOVE:
        num_tiles = 2
    tb = _round_up(-(-b // num_tiles), 16)
    bp = num_tiles * tb

    # Pad batch rows to the tile grid and features to 128 lanes; cast the
    # matmul input to bf16 here (it is cast at the MXU anyway).
    x_p = jnp.pad(x.astype(jnp.bfloat16), ((0, bp - b), (0, PAD - INP_DIM)))

    args = [x_p]
    for w, bias in params:
        args.append(w)
        args.append(bias)

    w_spec = pl.BlockSpec((PAD, PAD), lambda i: (0, 0))   # VMEM-resident weights
    b_spec = pl.BlockSpec((1, PAD), lambda i: (0, 0))
    in_specs = [pl.BlockSpec((tb, PAD), lambda i: (i, 0))]
    for _ in params:
        in_specs.append(w_spec)
        in_specs.append(b_spec)

    n_layers = len(params)
    weight_bytes = n_layers * (PAD * PAD * 2 + PAD * 4)
    cost = pl.CostEstimate(
        flops=2 * bp * PAD * PAD * n_layers,
        transcendentals=bp * (PAD + 1),        # exp + log (tanh is outside now)
        bytes_accessed=bp * PAD * (2 + 4) + weight_bytes)

    out = pl.pallas_call(
        _hexapawn_kernel,
        grid=(num_tiles,),
        in_specs=in_specs,
        out_specs=pl.BlockSpec((tb, PAD), lambda i: (i, 0)),
        out_shape=jax.ShapeDtypeStruct((bp, PAD), jnp.float32),
        compiler_params=pltpu.CompilerParams(
            dimension_semantics=("parallel",)),
        cost_estimate=cost,
    )(*args)

    log_pi = out[:b, :ACTION_SIZE]
    v = jnp.tanh(out[:b, ACTION_SIZE:ACTION_SIZE + 1])    # trivial (B,1) XLA op
    return log_pi, v


def init_params(key):
    """PyTorch-style init (uniform +/- 1/sqrt(fan_in)); weights stored as
    (in, out) bf16, lane-padded to 128; fc5/fc6 fused into one head."""
    def linear(k, fan_in, fan_out):
        bound = 1.0 / (fan_in ** 0.5)
        kw, kb = jax.random.split(k)
        w = jax.random.uniform(kw, (fan_in, fan_out), jnp.float32, -bound, bound)
        bvec = jax.random.uniform(kb, (fan_out,), jnp.float32, -bound, bound)
        return w, bvec

    keys = jax.random.split(key, 6)
    w1, b1 = linear(keys[0], INP_DIM, HIDDEN)
    w2, b2 = linear(keys[1], HIDDEN, HIDDEN)
    w3, b3 = linear(keys[2], HIDDEN, HIDDEN)
    w4, b4 = linear(keys[3], HIDDEN, HIDDEN)
    w5, b5 = linear(keys[4], HIDDEN, ACTION_SIZE)
    w6, b6 = linear(keys[5], HIDDEN, 1)

    # fc1: zero-pad the 21 input rows to 128.
    w1p = jnp.zeros((PAD, HIDDEN), jnp.float32).at[:INP_DIM, :].set(w1)

    # Fused head weight/bias: lanes 0..27 = fc5, lane 28 = fc6, rest zero.
    wh = jnp.zeros((HIDDEN, PAD), jnp.float32)
    wh = wh.at[:, :ACTION_SIZE].set(w5).at[:, ACTION_SIZE].set(w6[:, 0])
    bh = jnp.zeros((PAD,), jnp.float32)
    bh = bh.at[:ACTION_SIZE].set(b5).at[ACTION_SIZE].set(b6[0])

    def w_bf16(w):
        return w.astype(jnp.bfloat16)

    def b_f32(bvec):
        return bvec.reshape(1, PAD).astype(jnp.float32)

    return [
        (w_bf16(w1p), b_f32(b1)),
        (w_bf16(w2), b_f32(b2)),
        (w_bf16(w3), b_f32(b3)),
        (w_bf16(w4), b_f32(b4)),
        (w_bf16(wh), b_f32(bh)),
    ]


def reference_forward(x, params):
    """Plain-JAX reference with identical bf16-input / f32-accumulate math."""
    h = jnp.pad(x.astype(jnp.bfloat16), ((0, 0), (0, PAD - INP_DIM)))
    for (w, bias) in params[:4]:
        h = jnp.maximum(
            jnp.dot(h.astype(jnp.bfloat16), w,
                    preferred_element_type=jnp.float32) + bias, 0.0)
    wh, bh = params[4]
    head = jnp.dot(h.astype(jnp.bfloat16), wh,
                   preferred_element_type=jnp.float32) + bh
    logits = head[:, :ACTION_SIZE]
    logp = logits - jax.scipy.special.logsumexp(logits, axis=1, keepdims=True)
    v = jnp.tanh(head[:, ACTION_SIZE:ACTION_SIZE + 1])
    return logp, v


if __name__ == "__main__":
    key = jax.random.PRNGKey(0)
    pkey, xkey = jax.random.split(key)
    params = init_params(pkey)

    # batch=5 exercises the single-tile path (tb=16, row-padded);
    # batch=300 exercises the balanced 2-tile path (2 x 160 rows).
    for batch in (5, 300):
        xb = jax.random.uniform(jax.random.fold_in(xkey, batch),
                                (batch, INP_DIM), jnp.float32)
        log_pi, v = hexapawn_forward(xb, params)
        jax.block_until_ready((log_pi, v))

        ref_pi, ref_v = reference_forward(xb, params)
        assert log_pi.shape == (batch, ACTION_SIZE)
        assert v.shape == (batch, 1)
        # NOTE: 2e-3 tolerance validated for small random-init weights; with
        # trained weights (larger logits) widen the bf16-vs-fp32 tolerance.
        assert jnp.allclose(log_pi, ref_pi, atol=2e-3, rtol=2e-3), \
            float(jnp.max(jnp.abs(log_pi - ref_pi)))
        assert jnp.allclose(v, ref_v, atol=2e-3, rtol=2e-3), \
            float(jnp.max(jnp.abs(v - ref_v)))
        # log_softmax rows must normalize to 1 in probability space.
        assert jnp.allclose(jnp.sum(jnp.exp(log_pi), axis=1), 1.0, atol=1e-3)

    print("KERNEL_OK")
</pallas_src>

<mosaic_0001>
module attributes {stable_mosaic.version = 11 : i64} {
  func.func @_hexapawn_kernel(%arg0: i32, %arg1: memref<16x128xbf16, #tpu.memory_space<vmem>>, %arg2: memref<128x128xbf16, #tpu.memory_space<vmem>>, %arg3: memref<1x128xf32, #tpu.memory_space<vmem>>, %arg4: memref<128x128xbf16, #tpu.memory_space<vmem>>, %arg5: memref<1x128xf32, #tpu.memory_space<vmem>>, %arg6: memref<128x128xbf16, #tpu.memory_space<vmem>>, %arg7: memref<1x128xf32, #tpu.memory_space<vmem>>, %arg8: memref<128x128xbf16, #tpu.memory_space<vmem>>, %arg9: memref<1x128xf32, #tpu.memory_space<vmem>>, %arg10: memref<128x128xbf16, #tpu.memory_space<vmem>>, %arg11: memref<1x128xf32, #tpu.memory_space<vmem>>, %arg12: memref<16x128xf32, #tpu.memory_space<vmem>>) attributes {dimension_semantics = [#tpu.dimension_semantics<parallel>], iteration_bounds = array<i64: 1>, scalar_prefetch = 0 : i64, scratch_operands = 0 : i64, tpu.core_type = #tpu.core_type<tc>, window_params = [{transform_indices = @transform_0, window_bounds = array<i64: 16, 128>}, {pipeline_mode = #tpu.pipeline_mode<synchronous>, transform_indices = @transform_1, window_bounds = array<i64: 128, 128>}, {pipeline_mode = #tpu.pipeline_mode<synchronous>, transform_indices = @transform_2, window_bounds = array<i64: 1, 128>}, {pipeline_mode = #tpu.pipeline_mode<synchronous>, transform_indices = @transform_3, window_bounds = array<i64: 128, 128>}, {pipeline_mode = #tpu.pipeline_mode<synchronous>, transform_indices = @transform_4, window_bounds = array<i64: 1, 128>}, {pipeline_mode = #tpu.pipeline_mode<synchronous>, transform_indices = @transform_5, window_bounds = array<i64: 128, 128>}, {pipeline_mode = #tpu.pipeline_mode<synchronous>, transform_indices = @transform_6, window_bounds = array<i64: 1, 128>}, {pipeline_mode = #tpu.pipeline_mode<synchronous>, transform_indices = @transform_7, window_bounds = array<i64: 128, 128>}, {pipeline_mode = #tpu.pipeline_mode<synchronous>, transform_indices = @transform_8, window_bounds = array<i64: 1, 128>}, {pipeline_mode = #tpu.pipeline_mode<synchronous>, transform_indices = @transform_9, window_bounds = array<i64: 128, 128>}, {pipeline_mode = #tpu.pipeline_mode<synchronous>, transform_indices = @transform_10, window_bounds = array<i64: 1, 128>}, {transform_indices = @transform_11, window_bounds = array<i64: 16, 128>}]} {
    %c0 = arith.constant 0 : index
    %c0_0 = arith.constant 0 : index
    %0 = vector.load %arg1[%c0, %c0_0] : memref<16x128xbf16, #tpu.memory_space<vmem>>, vector<8x128xbf16>
    %c0_1 = arith.constant 0 : index
    %c0_2 = arith.constant 0 : index
    %1 = vector.load %arg2[%c0_1, %c0_2] : memref<128x128xbf16, #tpu.memory_space<vmem>>, vector<128x128xbf16>
    %cst = arith.constant dense<0.000000e+00> : vector<8x128xf32>
    %2 = tpu.matmul %0, %1, %cst {dimension_numbers = #tpu.dot_dimension_numbers<[1], [0], [0], [1], [0, 0, 1, 1], [], []>} : vector<8x128xbf16>, vector<128x128xbf16>, vector<8x128xf32> -> vector<8x128xf32>
    %c0_3 = arith.constant 0 : index
    %c0_4 = arith.constant 0 : index
    %3 = vector.load %arg3[%c0_3, %c0_4] : memref<1x128xf32, #tpu.memory_space<vmem>>, vector<1x128xf32>
    %4 = vector.broadcast %3 : vector<1x128xf32> to vector<8x128xf32>
    %5 = arith.addf %2, %4 : vector<8x128xf32>
    %cst_5 = arith.constant 0.000000e+00 : f32
    %6 = vector.broadcast %cst_5 : f32 to vector<8x128xf32>
    %7 = arith.maximumf %5, %6 : vector<8x128xf32>
    %8 = arith.truncf %7 : vector<8x128xf32> to vector<8x128xbf16>
    %c0_6 = arith.constant 0 : index
    %c0_7 = arith.constant 0 : index
    %9 = vector.load %arg4[%c0_6, %c0_7] : memref<128x128xbf16, #tpu.memory_space<vmem>>, vector<128x128xbf16>
    %cst_8 = arith.constant dense<0.000000e+00> : vector<8x128xf32>
    %10 = tpu.matmul %8, %9, %cst_8 {dimension_numbers = #tpu.dot_dimension_numbers<[1], [0], [0], [1], [0, 0, 1, 1], [], []>} : vector<8x128xbf16>, vector<128x128xbf16>, vector<8x128xf32> -> vector<8x128xf32>
    %c0_9 = arith.constant 0 : index
    %c0_10 = arith.constant 0 : index
    %11 = vector.load %arg5[%c0_9, %c0_10] : memref<1x128xf32, #tpu.memory_space<vmem>>, vector<1x128xf32>
    %12 = vector.broadcast %11 : vector<1x128xf32> to vector<8x128xf32>
    %13 = arith.addf %10, %12 : vector<8x128xf32>
    %cst_11 = arith.constant 0.000000e+00 : f32
    %14 = vector.broadcast %cst_11 : f32 to vector<8x128xf32>
    %15 = arith.maximumf %13, %14 : vector<8x128xf32>
    %16 = arith.truncf %15 : vector<8x128xf32> to vector<8x128xbf16>
    %c0_12 = arith.constant 0 : index
    %c0_13 = arith.constant 0 : index
    %17 = vector.load %arg6[%c0_12, %c0_13] : memref<128x128xbf16, #tpu.memory_space<vmem>>, vector<128x128xbf16>
    %cst_14 = arith.constant dense<0.000000e+00> : vector<8x128xf32>
    %18 = tpu.matmul %16, %17, %cst_14 {dimension_numbers = #tpu.dot_dimension_numbers<[1], [0], [0], [1], [0, 0, 1, 1], [], []>} : vector<8x128xbf16>, vector<128x128xbf16>, vector<8x128xf32> -> vector<8x128xf32>
    %c0_15 = arith.constant 0 : index
    %c0_16 = arith.constant 0 : index
    %19 = vector.load %arg7[%c0_15, %c0_16] : memref<1x128xf32, #tpu.memory_space<vmem>>, vector<1x128xf32>
    %20 = vector.broadcast %19 : vector<1x128xf32> to vector<8x128xf32>
    %21 = arith.addf %18, %20 : vector<8x128xf32>
    %cst_17 = arith.constant 0.000000e+00 : f32
    %22 = vector.broadcast %cst_17 : f32 to vector<8x128xf32>
    %23 = arith.maximumf %21, %22 : vector<8x128xf32>
    %24 = arith.truncf %23 : vector<8x128xf32> to vector<8x128xbf16>
    %c0_18 = arith.constant 0 : index
    %c0_19 = arith.constant 0 : index
    %25 = vector.load %arg8[%c0_18, %c0_19] : memref<128x128xbf16, #tpu.memory_space<vmem>>, vector<128x128xbf16>
    %cst_20 = arith.constant dense<0.000000e+00> : vector<8x128xf32>
    %26 = tpu.matmul %24, %25, %cst_20 {dimension_numbers = #tpu.dot_dimension_numbers<[1], [0], [0], [1], [0, 0, 1, 1], [], []>} : vector<8x128xbf16>, vector<128x128xbf16>, vector<8x128xf32> -> vector<8x128xf32>
    %c0_21 = arith.constant 0 : index
    %c0_22 = arith.constant 0 : index
    %27 = vector.load %arg9[%c0_21, %c0_22] : memref<1x128xf32, #tpu.memory_space<vmem>>, vector<1x128xf32>
    %28 = vector.broadcast %27 : vector<1x128xf32> to vector<8x128xf32>
    %29 = arith.addf %26, %28 : vector<8x128xf32>
    %cst_23 = arith.constant 0.000000e+00 : f32
    %30 = vector.broadcast %cst_23 : f32 to vector<8x128xf32>
    %31 = arith.maximumf %29, %30 : vector<8x128xf32>
    %32 = arith.truncf %31 : vector<8x128xf32> to vector<8x128xbf16>
    %c0_24 = arith.constant 0 : index
    %c0_25 = arith.constant 0 : index
    %33 = vector.load %arg10[%c0_24, %c0_25] : memref<128x128xbf16, #tpu.memory_space<vmem>>, vector<128x128xbf16>
    %cst_26 = arith.constant dense<0.000000e+00> : vector<8x128xf32>
    %34 = tpu.matmul %32, %33, %cst_26 {dimension_numbers = #tpu.dot_dimension_numbers<[1], [0], [0], [1], [0, 0, 1, 1], [], []>} : vector<8x128xbf16>, vector<128x128xbf16>, vector<8x128xf32> -> vector<8x128xf32>
    %c0_27 = arith.constant 0 : index
    %c0_28 = arith.constant 0 : index
    %35 = vector.load %arg11[%c0_27, %c0_28] : memref<1x128xf32, #tpu.memory_space<vmem>>, vector<1x128xf32>
    %36 = vector.broadcast %35 : vector<1x128xf32> to vector<8x128xf32>
    %37 = arith.addf %34, %36 : vector<8x128xf32>
    %38 = tpu.iota {dimensions = array<i32: 1>} : vector<8x128xi32>
    %c28_i32 = arith.constant 28 : i32
    %39 = vector.broadcast %c28_i32 : i32 to vector<8x128xi32>
    %40 = arith.cmpi slt, %38, %39 : vector<8x128xi32>
    %cst_29 = arith.constant -1.000000e+30 : f32
    %41 = vector.broadcast %cst_29 : f32 to vector<8x128xf32>
    %42 = arith.select %40, %37, %41 : vector<8x128xi1>, vector<8x128xf32>
    %cst_30 = arith.constant dense<0xFF800000> : vector<8xf32>
    %43 = vector.multi_reduction <maximumf>, %42, %cst_30 [1] : vector<8x128xf32> to vector<8xf32>
    %44 = vector.shape_cast %43 : vector<8xf32> to vector<8x1xf32>
    %45 = vector.broadcast %44 : vector<8x1xf32> to vector<8x128xf32>
    %46 = arith.subf %42, %45 : vector<8x128xf32>
    %47 = math.exp %46 : vector<8x128xf32>
    %cst_31 = arith.constant dense<0.000000e+00> : vector<8xf32>
    %48 = vector.multi_reduction <add>, %47, %cst_31 [1] : vector<8x128xf32> to vector<8xf32>
    %49 = vector.shape_cast %48 : vector<8xf32> to vector<8x1xf32>
    %50 = math.log %49 : vector<8x1xf32>
    %51 = vector.broadcast %50 : vector<8x1xf32> to vector<8x128xf32>
    %52 = arith.subf %46, %51 : vector<8x128xf32>
    %c28_i32_32 = arith.constant 28 : i32
    %53 = vector.broadcast %c28_i32_32 : i32 to vector<8x128xi32>
    %54 = arith.cmpi eq, %38, %53 : vector<8x128xi32>
    %cst_33 = arith.constant 0.000000e+00 : f32
    %55 = vector.broadcast %cst_33 : f32 to vector<8x128xf32>
    %56 = arith.select %54, %37, %55 : vector<8x128xi1>, vector<8x128xf32>
    %57 = arith.select %40, %52, %56 : vector<8x128xi1>, vector<8x128xf32>
    %c0_34 = arith.constant 0 : index
    %c0_35 = arith.constant 0 : index
    %58 = vector.load %arg12[%c0_34, %c0_35] : memref<16x128xf32, #tpu.memory_space<vmem>>, vector<8x128xf32>
    tpu.vector_store %arg12[%c0_34, %c0_35], %57 {strides = array<i32>} : memref<16x128xf32, #tpu.memory_space<vmem>>, vector<8x128xf32>,
    %c8 = arith.constant 8 : index
    %c0_36 = arith.constant 0 : index
    %59 = vector.load %arg1[%c8, %c0_36] : memref<16x128xbf16, #tpu.memory_space<vmem>>, vector<8x128xbf16>
    %c0_37 = arith.constant 0 : index
    %c0_38 = arith.constant 0 : index
    %60 = vector.load %arg2[%c0_37, %c0_38] : memref<128x128xbf16, #tpu.memory_space<vmem>>, vector<128x128xbf16>
    %cst_39 = arith.constant dense<0.000000e+00> : vector<8x128xf32>
    %61 = tpu.matmul %59, %60, %cst_39 {dimension_numbers = #tpu.dot_dimension_numbers<[1], [0], [0], [1], [0, 0, 1, 1], [], []>} : vector<8x128xbf16>, vector<128x128xbf16>, vector<8x128xf32> -> vector<8x128xf32>
    %c0_40 = arith.constant 0 : index
    %c0_41 = arith.constant 0 : index
    %62 = vector.load %arg3[%c0_40, %c0_41] : memref<1x128xf32, #tpu.memory_space<vmem>>, vector<1x128xf32>
    %63 = vector.broadcast %62 : vector<1x128xf32> to vector<8x128xf32>
    %64 = arith.addf %61, %63 : vector<8x128xf32>
    %cst_42 = arith.constant 0.000000e+00 : f32
    %65 = vector.broadcast %cst_42 : f32 to vector<8x128xf32>
    %66 = arith.maximumf %64, %65 : vector<8x128xf32>
    %67 = arith.truncf %66 : vector<8x128xf32> to vector<8x128xbf16>
    %c0_43 = arith.constant 0 : index
    %c0_44 = arith.constant 0 : index
    %68 = vector.load %arg4[%c0_43, %c0_44] : memref<128x128xbf16, #tpu.memory_space<vmem>>, vector<128x128xbf16>
    %cst_45 = arith.constant dense<0.000000e+00> : vector<8x128xf32>
    %69 = tpu.matmul %67, %68, %cst_45 {dimension_numbers = #tpu.dot_dimension_numbers<[1], [0], [0], [1], [0, 0, 1, 1], [], []>} : vector<8x128xbf16>, vector<128x128xbf16>, vector<8x128xf32> -> vector<8x128xf32>
    %c0_46 = arith.constant 0 : index
    %c0_47 = arith.constant 0 : index
    %70 = vector.load %arg5[%c0_46, %c0_47] : memref<1x128xf32, #tpu.memory_space<vmem>>, vector<1x128xf32>
    %71 = vector.broadcast %70 : vector<1x128xf32> to vector<8x128xf32>
    %72 = arith.addf %69, %71 : vector<8x128xf32>
    %cst_48 = arith.constant 0.000000e+00 : f32
    %73 = vector.broadcast %cst_48 : f32 to vector<8x128xf32>
    %74 = arith.maximumf %72, %73 : vector<8x128xf32>
    %75 = arith.truncf %74 : vector<8x128xf32> to vector<8x128xbf16>
    %c0_49 = arith.constant 0 : index
    %c0_50 = arith.constant 0 : index
    %76 = vector.load %arg6[%c0_49, %c0_50] : memref<128x128xbf16, #tpu.memory_space<vmem>>, vector<128x128xbf16>
    %cst_51 = arith.constant dense<0.000000e+00> : vector<8x128xf32>
    %77 = tpu.matmul %75, %76, %cst_51 {dimension_numbers = #tpu.dot_dimension_numbers<[1], [0], [0], [1], [0, 0, 1, 1], [], []>} : vector<8x128xbf16>, vector<128x128xbf16>, vector<8x128xf32> -> vector<8x128xf32>
    %c0_52 = arith.constant 0 : index
    %c0_53 = arith.constant 0 : index
    %78 = vector.load %arg7[%c0_52, %c0_53] : memref<1x128xf32, #tpu.memory_space<vmem>>, vector<1x128xf32>
    %79 = vector.broadcast %78 : vector<1x128xf32> to vector<8x128xf32>
    %80 = arith.addf %77, %79 : vector<8x128xf32>
    %cst_54 = arith.constant 0.000000e+00 : f32
    %81 = vector.broadcast %cst_54 : f32 to vector<8x128xf32>
    %82 = arith.maximumf %80, %81 : vector<8x128xf32>
    %83 = arith.truncf %82 : vector<8x128xf32> to vector<8x128xbf16>
    %c0_55 = arith.constant 0 : index
    %c0_56 = arith.constant 0 : index
    %84 = vector.load %arg8[%c0_55, %c0_56] : memref<128x128xbf16, #tpu.memory_space<vmem>>, vector<128x128xbf16>
    %cst_57 = arith.constant dense<0.000000e+00> : vector<8x128xf32>
    %85 = tpu.matmul %83, %84, %cst_57 {dimension_numbers = #tpu.dot_dimension_numbers<[1], [0], [0], [1], [0, 0, 1, 1], [], []>} : vector<8x128xbf16>, vector<128x128xbf16>, vector<8x128xf32> -> vector<8x128xf32>
    %c0_58 = arith.constant 0 : index
    %c0_59 = arith.constant 0 : index
    %86 = vector.load %arg9[%c0_58, %c0_59] : memref<1x128xf32, #tpu.memory_space<vmem>>, vector<1x128xf32>
    %87 = vector.broadcast %86 : vector<1x128xf32> to vector<8x128xf32>
    %88 = arith.addf %85, %87 : vector<8x128xf32>
    %cst_60 = arith.constant 0.000000e+00 : f32
    %89 = vector.broadcast %cst_60 : f32 to vector<8x128xf32>
    %90 = arith.maximumf %88, %89 : vector<8x128xf32>
    %91 = arith.truncf %90 : vector<8x128xf32> to vector<8x128xbf16>
    %c0_61 = arith.constant 0 : index
    %c0_62 = arith.constant 0 : index
    %92 = vector.load %arg10[%c0_61, %c0_62] : memref<128x128xbf16, #tpu.memory_space<vmem>>, vector<128x128xbf16>
    %cst_63 = arith.constant dense<0.000000e+00> : vector<8x128xf32>
    %93 = tpu.matmul %91, %92, %cst_63 {dimension_numbers = #tpu.dot_dimension_numbers<[1], [0], [0], [1], [0, 0, 1, 1], [], []>} : vector<8x128xbf16>, vector<128x128xbf16>, vector<8x128xf32> -> vector<8x128xf32>
    %c0_64 = arith.constant 0 : index
    %c0_65 = arith.constant 0 : index
    %94 = vector.load %arg11[%c0_64, %c0_65] : memref<1x128xf32, #tpu.memory_space<vmem>>, vector<1x128xf32>
    %95 = vector.broadcast %94 : vector<1x128xf32> to vector<8x128xf32>
    %96 = arith.addf %93, %95 : vector<8x128xf32>
    %97 = tpu.iota {dimensions = array<i32: 1>} : vector<8x128xi32>
    %c28_i32_66 = arith.constant 28 : i32
    %98 = vector.broadcast %c28_i32_66 : i32 to vector<8x128xi32>
    %99 = arith.cmpi slt, %97, %98 : vector<8x128xi32>
    %cst_67 = arith.constant -1.000000e+30 : f32
    %100 = vector.broadcast %cst_67 : f32 to vector<8x128xf32>
    %101 = arith.select %99, %96, %100 : vector<8x128xi1>, vector<8x128xf32>
    %cst_68 = arith.constant dense<0xFF800000> : vector<8xf32>
    %102 = vector.multi_reduction <maximumf>, %101, %cst_68 [1] : vector<8x128xf32> to vector<8xf32>
    %103 = vector.shape_cast %102 : vector<8xf32> to vector<8x1xf32>
    %104 = vector.broadcast %103 : vector<8x1xf32> to vector<8x128xf32>
    %105 = arith.subf %101, %104 : vector<8x128xf32>
    %106 = math.exp %105 : vector<8x128xf32>
    %cst_69 = arith.constant dense<0.000000e+00> : vector<8xf32>
    %107 = vector.multi_reduction <add>, %106, %cst_69 [1] : vector<8x128xf32> to vector<8xf32>
    %108 = vector.shape_cast %107 : vector<8xf32> to vector<8x1xf32>
    %109 = math.log %108 : vector<8x1xf32>
    %110 = vector.broadcast %109 : vector<8x1xf32> to vector<8x128xf32>
    %111 = arith.subf %105, %110 : vector<8x128xf32>
    %c28_i32_70 = arith.constant 28 : i32
    %112 = vector.broadcast %c28_i32_70 : i32 to vector<8x128xi32>
    %113 = arith.cmpi eq, %97, %112 : vector<8x128xi32>
    %cst_71 = arith.constant 0.000000e+00 : f32
    %114 = vector.broadcast %cst_71 : f32 to vector<8x128xf32>
    %115 = arith.select %113, %96, %114 : vector<8x128xi1>, vector<8x128xf32>
    %116 = arith.select %99, %111, %115 : vector<8x128xi1>, vector<8x128xf32>
    %c8_72 = arith.constant 8 : index
    %c0_73 = arith.constant 0 : index
    %117 = vector.load %arg12[%c8_72, %c0_73] : memref<16x128xf32, #tpu.memory_space<vmem>>, vector<8x128xf32>
    tpu.vector_store %arg12[%c8_72, %c0_73], %116 {strides = array<i32>} : memref<16x128xf32, #tpu.memory_space<vmem>>, vector<8x128xf32>,
    return
  }
  func.func @transform_0(%arg0: i32) -> (i32, i32) {
    %c0_i32 = arith.constant 0 : i32
    %c0_i32_0 = arith.constant 0 : i32
    return %arg0, %c0_i32 : i32, i32
  }
  func.func @transform_1(%arg0: i32) -> (i32, i32) {
    %c0_i32 = arith.constant 0 : i32
    %c0_i32_0 = arith.constant 0 : i32
    %c0_i32_1 = arith.constant 0 : i32
    return %c0_i32, %c0_i32_0 : i32, i32
  }
  func.func @transform_2(%arg0: i32) -> (i32, i32) {
    %c0_i32 = arith.constant 0 : i32
    %c0_i32_0 = arith.constant 0 : i32
    %c0_i32_1 = arith.constant 0 : i32
    return %c0_i32, %c0_i32_0 : i32, i32
  }
  func.func @transform_3(%arg0: i32) -> (i32, i32) {
    %c0_i32 = arith.constant 0 : i32
    %c0_i32_0 = arith.constant 0 : i32
    %c0_i32_1 = arith.constant 0 : i32
    return %c0_i32, %c0_i32_0 : i32, i32
  }
  func.func @transform_4(%arg0: i32) -> (i32, i32) {
    %c0_i32 = arith.constant 0 : i32
    %c0_i32_0 = arith.constant 0 : i32
    %c0_i32_1 = arith.constant 0 : i32
    return %c0_i32, %c0_i32_0 : i32, i32
  }
  func.func @transform_5(%arg0: i32) -> (i32, i32) {
    %c0_i32 = arith.constant 0 : i32
    %c0_i32_0 = arith.constant 0 : i32
    %c0_i32_1 = arith.constant 0 : i32
    return %c0_i32, %c0_i32_0 : i32, i32
  }
  func.func @transform_6(%arg0: i32) -> (i32, i32) {
    %c0_i32 = arith.constant 0 : i32
    %c0_i32_0 = arith.constant 0 : i32
    %c0_i32_1 = arith.constant 0 : i32
    return %c0_i32, %c0_i32_0 : i32, i32
  }
  func.func @transform_7(%arg0: i32) -> (i32, i32) {
    %c0_i32 = arith.constant 0 : i32
    %c0_i32_0 = arith.constant 0 : i32
    %c0_i32_1 = arith.constant 0 : i32
    return %c0_i32, %c0_i32_0 : i32, i32
  }
  func.func @transform_8(%arg0: i32) -> (i32, i32) {
    %c0_i32 = arith.constant 0 : i32
    %c0_i32_0 = arith.constant 0 : i32
    %c0_i32_1 = arith.constant 0 : i32
    return %c0_i32, %c0_i32_0 : i32, i32
  }
  func.func @transform_9(%arg0: i32) -> (i32, i32) {
    %c0_i32 = arith.constant 0 : i32
    %c0_i32_0 = arith.constant 0 : i32
    %c0_i32_1 = arith.constant 0 : i32
    return %c0_i32, %c0_i32_0 : i32, i32
  }
  func.func @transform_10(%arg0: i32) -> (i32, i32) {
    %c0_i32 = arith.constant 0 : i32
    %c0_i32_0 = arith.constant 0 : i32
    %c0_i32_1 = arith.constant 0 : i32
    return %c0_i32, %c0_i32_0 : i32, i32
  }
  func.func @transform_11(%arg0: i32) -> (i32, i32) {
    %c0_i32 = arith.constant 0 : i32
    %c0_i32_0 = arith.constant 0 : i32
    return %arg0, %c0_i32 : i32, i32
  }
}

</mosaic_0001>

<llo_original>
// kernel: hexapawn_forward.1
$region0: #{hexapawn_forward.1}
  #allocation0 [shape = 'u32[]', space=smem, size = 0x4, offset = 0x4, fixed_abs, tag = 'smem constant byte address 0x4 - core index']
  #allocation1 [shape = 'u32[144,128]{1,0:T(1,128)}', space=vmem, size = 0x12000, scoped, tag = 'internal scratch']
  %s0 = inlined_call_operand.vmem [shape: bf16[16,128], index: 0, kind: input, shape index: {}]
  %s1 = inlined_call_operand.hbm [shape: bf16[128,128], index: 1, kind: input, shape index: {}]
  %s2 = inlined_call_operand.vmem [shape: f32[1,128], index: 2, kind: input, shape index: {}]
  %s3 = inlined_call_operand.hbm [shape: bf16[128,128], index: 3, kind: input, shape index: {}]
  %s4 = inlined_call_operand.vmem [shape: f32[1,128], index: 4, kind: input, shape index: {}]
  %s5 = inlined_call_operand.hbm [shape: bf16[128,128], index: 5, kind: input, shape index: {}]
  %s6 = inlined_call_operand.vmem [shape: f32[1,128], index: 6, kind: input, shape index: {}]
  %s7 = inlined_call_operand.hbm [shape: bf16[128,128], index: 7, kind: input, shape index: {}]
  %s8 = inlined_call_operand.vmem [shape: f32[1,128], index: 8, kind: input, shape index: {}]
  %s9 = inlined_call_operand.hbm [shape: bf16[128,128], index: 9, kind: input, shape index: {}]
  %s10 = inlined_call_operand.vmem [shape: f32[1,128], index: 10, kind: input, shape index: {}]
  %s11 = inlined_call_operand.vmem [shape: f32[16,128], index: 11, kind: output, shape index: {}]
  %s12 = sld [smem:[#allocation0]]
  $region74: #{hexapawn_forward.1} parent=0
    _
  %s14 = ssub.s32 1, %s12
  %s15 = scalar_select 0, %s14, %s12
  $region1: #{hexapawn_forward.1} parent=0
    #allocation2 [shape = 'u8[32768]{0}', space=vmem, size = 0x8000, scoped, tag = 'input window, operand 1, single buffered']
    #allocation3 [shape = 's32[1]{0}', space=sflag, size = 0x4, scoped, tag = 'scoped memory for hexapawn_forward.1']
    #allocation4 [shape = 'u8[32768]{0}', space=vmem, size = 0x8000, scoped, tag = 'input window, operand 3, single buffered']
    #allocation5 [shape = 's32[1]{0}', space=sflag, size = 0x4, scoped, tag = 'scoped memory for hexapawn_forward.1']
    #allocation6 [shape = 'u8[32768]{0}', space=vmem, size = 0x8000, scoped, tag = 'input window, operand 5, single buffered']
    #allocation7 [shape = 'u8[32768]{0}', space=vmem, size = 0x8000, scoped, tag = 'input window, operand 7, single buffered']
    #allocation8 [shape = 's32[1]{0}', space=sflag, size = 0x4, scoped, tag = 'scoped memory for hexapawn_forward.1']
    #allocation9 [shape = 'u8[32768]{0}', space=vmem, size = 0x8000, scoped, tag = 'input window, operand 9, single buffered']
    %16 = vsyncpa [#allocation3], 0
    %17 = vsyncpa [#allocation5], 0
    %18 = vsyncpa [#allocation8], 0
    // Predicated region
    $region2: #{hexapawn_forward.1} parent=1 // pred_check
      _
    $region3: #{hexapawn_forward.1} parent=1 // pred_check_branch
      %20 = sbr.rel (0) target = $region5
    $region4: #{hexapawn_forward.1} parent=1 // pred_region
      _
    $region5: #{hexapawn_forward.1} parent=1 // pred_fallthru
      _
    // Predicated region
    $region6: #{hexapawn_forward.1} parent=1 // pred_check
      _
    $region7: #{hexapawn_forward.1} parent=1 // pred_check_branch
      %22 = sbr.rel (0) target = $region9
    $region8: #{hexapawn_forward.1} parent=1 // pred_region
      %s24 = ssub.s32 1024, 1024
      %25 = vsyncadd [#allocation3], %s24
      %s26 = sshll.u32 [#allocation2], 4
      %s27 = int_to_ptr.vmem [resolvable:$true] %s26
      %32 = dma.hbm_to_vmem [thread:$0]  %s1, 1024, %s27, [#allocation3], 64, 64, 4
    $region9: #{hexapawn_forward.1} parent=1 // pred_fallthru
      _
    // Predicated region
    $region10: #{hexapawn_forward.1} parent=1 // pred_check
      _
    $region11: #{hexapawn_forward.1} parent=1 // pred_check_branch
      %34 = sbr.rel (0) target = $region13
    $region12: #{hexapawn_forward.1} parent=1 // pred_region
      _
    $region13: #{hexapawn_forward.1} parent=1 // pred_fallthru
      _
    // Predicated region
    $region14: #{hexapawn_forward.1} parent=1 // pred_check
      _
    $region15: #{hexapawn_forward.1} parent=1 // pred_check_branch
      %36 = sbr.rel (0) target = $region17
    $region16: #{hexapawn_forward.1} parent=1 // pred_region
      %s38 = ssub.s32 1024, 1024
      %39 = vsyncadd [#allocation5], %s38
      %s40 = sshll.u32 [#allocation4], 4
      %s41 = int_to_ptr.vmem [resolvable:$true] %s40
      %46 = dma.hbm_to_vmem [thread:$0]  %s3, 1024, %s41, [#allocation5], 64, 64, 4
    $region17: #{hexapawn_forward.1} parent=1 // pred_fallthru
      _
    // Predicated region
    $region18: #{hexapawn_forward.1} parent=1 // pred_check
      _
    $region19: #{hexapawn_forward.1} parent=1 // pred_check_branch
      %48 = sbr.rel (0) target = $region21
    $region20: #{hexapawn_forward.1} parent=1 // pred_region
      _
    $region21: #{hexapawn_forward.1} parent=1 // pred_fallthru
      _
    // Predicated region
    $region22: #{hexapawn_forward.1} parent=1 // pred_check
      _
    $region23: #{hexapawn_forward.1} parent=1 // pred_check_branch
      %50 = sbr.rel (0) target = $region25
    $region24: #{hexapawn_forward.1} parent=1 // pred_region
      %s52 = ssub.s32 1024, 1024
      %53 = vsyncadd [#allocation5], %s52
      %s54 = sshll.u32 [#allocation6], 4
      %s55 = int_to_ptr.vmem [resolvable:$true] %s54
      %60 = dma.hbm_to_vmem [thread:$0]  %s5, 1024, %s55, [#allocation5], 64, 64, 4
    $region25: #{hexapawn_forward.1} parent=1 // pred_fallthru
      _
    // Predicated region
    $region26: #{hexapawn_forward.1} parent=1 // pred_check
      _
    $region27: #{hexapawn_forward.1} parent=1 // pred_check_branch
      %62 = sbr.rel (0) target = $region29
    $region28: #{hexapawn_forward.1} parent=1 // pred_region
      _
    $region29: #{hexapawn_forward.1} parent=1 // pred_fallthru
      _
    // Predicated region
    $region30: #{hexapawn_forward.1} parent=1 // pred_check
      _
    $region31: #{hexapawn_forward.1} parent=1 // pred_check_branch
      %64 = sbr.rel (0) target = $region33
    $region32: #{hexapawn_forward.1} parent=1 // pred_region
      %s66 = ssub.s32 1024, 1024
      %67 = vsyncadd [#allocation8], %s66
      %s68 = sshll.u32 [#allocation7], 4
      %s69 = int_to_ptr.vmem [resolvable:$true] %s68
      %74 = dma.hbm_to_vmem [thread:$0]  %s7, 1024, %s69, [#allocation8], 64, 64, 4
    $region33: #{hexapawn_forward.1} parent=1 // pred_fallthru
      _
    // Predicated region
    $region34: #{hexapawn_forward.1} parent=1 // pred_check
      _
    $region35: #{hexapawn_forward.1} parent=1 // pred_check_branch
      %76 = sbr.rel (0) target = $region37
    $region36: #{hexapawn_forward.1} parent=1 // pred_region
      _
    $region37: #{hexapawn_forward.1} parent=1 // pred_fallthru
      _
    // Predicated region
    $region38: #{hexapawn_forward.1} parent=1 // pred_check
      _
    $region39: #{hexapawn_forward.1} parent=1 // pred_check_branch
      %78 = sbr.rel (0) target = $region41
    $region40: #{hexapawn_forward.1} parent=1 // pred_region
      %s80 = ssub.s32 1024, 1024
      %81 = vsyncadd [#allocation8], %s80
      %s82 = sshll.u32 [#allocation9], 4
      %s83 = int_to_ptr.vmem [resolvable:$true] %s82
      %88 = dma.hbm_to_vmem [thread:$0]  %s9, 1024, %s83, [#allocation8], 64, 64, 4
    $region41: #{hexapawn_forward.1} parent=1 // pred_fallthru
      _
    // Predicated region
    $region42: #{hexapawn_forward.1} parent=1 // pred_check
      _
    $region43: #{hexapawn_forward.1} parent=1 // pred_check_branch
      %90 = sbr.rel (0) target = $region45
    $region44: #{hexapawn_forward.1} parent=1 // pred_region
      _
    $region45: #{hexapawn_forward.1} parent=1 // pred_fallthru
      _
    // Predicated region
    $region46: #{hexapawn_forward.1} parent=1 // pred_check
      _
    $region47: #{hexapawn_forward.1} parent=1 // pred_check_branch
      %92 = sbr.rel (0) target = $region49
    $region48: #{hexapawn_forward.1} parent=1 // pred_region
      %93 = dma.done [#allocation3], 1024
    $region49: #{hexapawn_forward.1} parent=1 // pred_fallthru
      _
    // Predicated region
    $region50: #{hexapawn_forward.1} parent=1 // pred_check
      _
    $region51: #{hexapawn_forward.1} parent=1 // pred_check_branch
      %95 = sbr.rel (0) target = $region53
    $region52: #{hexapawn_forward.1} parent=1 // pred_region
      %96 = dma.done [#allocation5], 1024
    $region53: #{hexapawn_forward.1} parent=1 // pred_fallthru
      _
    // Predicated region
    $region54: #{hexapawn_forward.1} parent=1 // pred_check
      _
    $region55: #{hexapawn_forward.1} parent=1 // pred_check_branch
      %98 = sbr.rel (0) target = $region57
    $region56: #{hexapawn_forward.1} parent=1 // pred_region
      %99 = dma.done [#allocation5], 1024
    $region57: #{hexapawn_forward.1} parent=1 // pred_fallthru
      _
    // Predicated region
    $region58: #{hexapawn_forward.1} parent=1 // pred_check
      _
    $region59: #{hexapawn_forward.1} parent=1 // pred_check_branch
      %101 = sbr.rel (0) target = $region61
    $region60: #{hexapawn_forward.1} parent=1 // pred_region
      %102 = dma.done [#allocation8], 1024
    $region61: #{hexapawn_forward.1} parent=1 // pred_fallthru
      _
    // Predicated region
    $region62: #{hexapawn_forward.1} parent=1 // pred_check
      _
    $region63: #{hexapawn_forward.1} parent=1 // pred_check_branch
      %104 = sbr.rel (0) target = $region65
    $region64: #{hexapawn_forward.1} parent=1 // pred_region
      %105 = dma.done [#allocation8], 1024
    $region65: #{hexapawn_forward.1} parent=1 // pred_fallthru
      _
    %v107 = vld [vmem:[%s0] sm:$0xf]
    %v108 = vld [vmem:[#allocation2] sm:$0xf]
    %v109 = vld [vmem:[#allocation2 + $0x4] sm:$0xf]
    %v110 = vld [vmem:[#allocation2 + $0x8] sm:$0xf]
    %v111 = vld [vmem:[#allocation2 + $0xc] sm:$0xf]
    %v112 = vld [vmem:[#allocation2 + $0x10] sm:$0xf]
    %v113 = vld [vmem:[#allocation2 + $0x14] sm:$0xf]
    %v114 = vld [vmem:[#allocation2 + $0x18] sm:$0xf]
    %v115 = vld [vmem:[#allocation2 + $0x1c] sm:$0xf]
    %v116 = vld [vmem:[#allocation2 + $0x20] sm:$0xf]
    %v117 = vld [vmem:[#allocation2 + $0x24] sm:$0xf]
    %v118 = vld [vmem:[#allocation2 + $0x28] sm:$0xf]
    %v119 = vld [vmem:[#allocation2 + $0x2c] sm:$0xf]
    %v120 = vld [vmem:[#allocation2 + $0x30] sm:$0xf]
    %v121 = vld [vmem:[#allocation2 + $0x34] sm:$0xf]
    %v122 = vld [vmem:[#allocation2 + $0x38] sm:$0xf]
    %v123 = vld [vmem:[#allocation2 + $0x3c] sm:$0xf]
    %v124 = vld [vmem:[%s2] sm:$0x1]
    %v126 = vlaneseq
    %v127 = vshrl.u32 %v126, 7
    %v128 = vsub.s32 0, %v127
    %v129 = vrot.slane %v124, %v128
    %v147 = vunpack.c.l.b16 %v108
    %v148 = vunpack.c.l.b16 %v109
    %v149 = vunpack.c.l.b16 %v110
    %v150 = vunpack.c.l.b16 %v111
    %v151 = vunpack.c.l.b16 %v112
    %v152 = vunpack.c.l.b16 %v113
    %v153 = vunpack.c.l.b16 %v114
    %v154 = vunpack.c.l.b16 %v115
    %v155 = vunpack.c.l.b16 %v116
    %v156 = vunpack.c.l.b16 %v117
    %v157 = vunpack.c.l.b16 %v118
    %v158 = vunpack.c.l.b16 %v119
    %v159 = vunpack.c.l.b16 %v120
    %v160 = vunpack.c.l.b16 %v121
    %v161 = vunpack.c.l.b16 %v122
    %v162 = vunpack.c.l.b16 %v123
    %v163 = vpack.c.b16 %v148, %v147
    %v164 = vpack.c.b16 %v150, %v149
    %v165 = vpack.c.b16 %v152, %v151
    %v166 = vpack.c.b16 %v154, %v153
    %v167 = vpack.c.b16 %v156, %v155
    %v168 = vpack.c.b16 %v158, %v157
    %v169 = vpack.c.b16 %v160, %v159
    %v170 = vpack.c.b16 %v162, %v161
    %179 = vmatprep.subr.bf16.mxu0 0
    %180 = vmatpush1.bf16.msra.mxu0 %v163
    %181 = vmatprep.subr.bf16.mxu0 0
    %182 = vmatpush1.bf16.msra.mxu0 %v164
    %183 = vmatprep.subr.bf16.mxu0 0
    %184 = vmatpush1.bf16.msra.mxu0 %v165
    %185 = vmatprep.subr.bf16.mxu0 0
    %186 = vmatpush1.bf16.msra.mxu0 %v166
    %187 = vmatprep.subr.bf16.mxu0 0
    %188 = vmatpush1.bf16.msra.mxu0 %v167
    %189 = vmatprep.subr.bf16.mxu0 0
    %190 = vmatpush1.bf16.msra.mxu0 %v168
    %191 = vmatprep.subr.bf16.mxu0 0
    %192 = vmatpush1.bf16.msra.mxu0 %v169
    %193 = vmatprep.subr.bf16.mxu0 0
    %194 = vmatpush1.bf16.msra.mxu0 %v170
    %195 = vmatprep.subr.bf16.mxu0 0
    %196 = vmatpush1.bf16.msra.mxu0 0
    %197 = vmatprep.subr.bf16.mxu0 0
    %198 = vmatpush1.bf16.msra.mxu0 0
    %199 = vmatprep.subr.bf16.mxu0 0
    %200 = vmatpush1.bf16.msra.mxu0 0
    %201 = vmatprep.subr.bf16.mxu0 0
    %202 = vmatpush1.bf16.msra.mxu0 0
    %203 = vmatprep.subr.bf16.mxu0 0
    %204 = vmatpush1.bf16.msra.mxu0 0
    %205 = vmatprep.subr.bf16.mxu0 0
    %206 = vmatpush1.bf16.msra.mxu0 0
    %207 = vmatprep.subr.bf16.mxu0 0
    %208 = vmatpush1.bf16.msra.mxu0 0
    %209 = vmatprep.subr.bf16.mxu0 0
    %210 = vmatpush1.bf16.msra.mxu0 0
    %211 = vmatprep.mubr.bf16.mxu0 0
    %212 = vmatmul.mubr.bf16.gmra.mrb[0].mxu0 %v107
    %v213 = vpop.f32.mrb[0].mxu0
    %v214 = vadd.f32 %v129, %v213
    %v215 = vpop.f32.mrb[0].mxu0
    %v216 = vpop.f32.mrb[0].mxu0
    %v217 = vpop.f32.mrb[0].mxu0
    %218 = vdwg.mxu0
    %v219 = vmax.f32 %v214, 0.0
    %v220 = vpack.c.bf16 %v219, %v219
    %v221 = vld [vmem:[#allocation4] sm:$0xf]
    %v222 = vld [vmem:[#allocation4 + $0x4] sm:$0xf]
    %v223 = vld [vmem:[#allocation4 + $0x8] sm:$0xf]
    %v224 = vld [vmem:[#allocation4 + $0xc] sm:$0xf]
    %v225 = vld [vmem:[#allocation4 + $0x10] sm:$0xf]
    %v226 = vld [vmem:[#allocation4 + $0x14] sm:$0xf]
    %v227 = vld [vmem:[#allocation4 + $0x18] sm:$0xf]
    %v228 = vld [vmem:[#allocation4 + $0x1c] sm:$0xf]
    %v229 = vld [vmem:[#allocation4 + $0x20] sm:$0xf]
    %v230 = vld [vmem:[#allocation4 + $0x24] sm:$0xf]
    %v231 = vld [vmem:[#allocation4 + $0x28] sm:$0xf]
    %v232 = vld [vmem:[#allocation4 + $0x2c] sm:$0xf]
    %v233 = vld [vmem:[#allocation4 + $0x30] sm:$0xf]
    %v234 = vld [vmem:[#allocation4 + $0x34] sm:$0xf]
    %v235 = vld [vmem:[#allocation4 + $0x38] sm:$0xf]
    %v236 = vld [vmem:[#allocation4 + $0x3c] sm:$0xf]
    %v237 = vld [vmem:[%s4] sm:$0x1]
    %v239 = vlaneseq
    %v240 = vshrl.u32 %v239, 7
    %v241 = vsub.s32 0, %v240
    %v242 = vrot.slane %v237, %v241
    %v260 = vunpack.c.l.b16 %v221
    %v261 = vunpack.c.l.b16 %v222
    %v262 = vunpack.c.l.b16 %v223
    %v263 = vunpack.c.l.b16 %v224
    %v264 = vunpack.c.l.b16 %v225
    %v265 = vunpack.c.l.b16 %v226
    %v266 = vunpack.c.l.b16 %v227
    %v267 = vunpack.c.l.b16 %v228
    %v268 = vunpack.c.l.b16 %v229
    %v269 = vunpack.c.l.b16 %v230
    %v270 = vunpack.c.l.b16 %v231
    %v271 = vunpack.c.l.b16 %v232
    %v272 = vunpack.c.l.b16 %v233
    %v273 = vunpack.c.l.b16 %v234
    %v274 = vunpack.c.l.b16 %v235
    %v275 = vunpack.c.l.b16 %v236
    %v276 = vpack.c.b16 %v261, %v260
    %v277 = vpack.c.b16 %v263, %v262
    %v278 = vpack.c.b16 %v265, %v264
    %v279 = vpack.c.b16 %v267, %v266
    %v280 = vpack.c.b16 %v269, %v268
    %v281 = vpack.c.b16 %v271, %v270
    %v282 = vpack.c.b16 %v273, %v272
    %v283 = vpack.c.b16 %v275, %v274
    %292 = vmatprep.subr.bf16.mxu0 0
    %293 = vmatpush1.bf16.msra.mxu0 %v276
    %294 = vmatprep.subr.bf16.mxu0 0
    %295 = vmatpush1.bf16.msra.mxu0 %v277
    %296 = vmatprep.subr.bf16.mxu0 0
    %297 = vmatpush1.bf16.msra.mxu0 %v278
    %298 = vmatprep.subr.bf16.mxu0 0
    %299 = vmatpush1.bf16.msra.mxu0 %v279
    %300 = vmatprep.subr.bf16.mxu0 0
    %301 = vmatpush1.bf16.msra.mxu0 %v280
    %302 = vmatprep.subr.bf16.mxu0 0
    %303 = vmatpush1.bf16.msra.mxu0 %v281
    %304 = vmatprep.subr.bf16.mxu0 0
    %305 = vmatpush1.bf16.msra.mxu0 %v282
    %306 = vmatprep.subr.bf16.mxu0 0
    %307 = vmatpush1.bf16.msra.mxu0 %v283
    %308 = vmatprep.subr.bf16.mxu0 0
    %309 = vmatpush1.bf16.msra.mxu0 0
    %310 = vmatprep.subr.bf16.mxu0 0
    %311 = vmatpush1.bf16.msra.mxu0 0
    %312 = vmatprep.subr.bf16.mxu0 0
    %313 = vmatpush1.bf16.msra.mxu0 0
    %314 = vmatprep.subr.bf16.mxu0 0
    %315 = vmatpush1.bf16.msra.mxu0 0
    %316 = vmatprep.subr.bf16.mxu0 0
    %317 = vmatpush1.bf16.msra.mxu0 0
    %318 = vmatprep.subr.bf16.mxu0 0
    %319 = vmatpush1.bf16.msra.mxu0 0
    %320 = vmatprep.subr.bf16.mxu0 0
    %321 = vmatpush1.bf16.msra.mxu0 0
    %322 = vmatprep.subr.bf16.mxu0 0
    %323 = vmatpush1.bf16.msra.mxu0 0
    %324 = vmatprep.mubr.bf16.mxu0 0
    %325 = vmatmul.mubr.bf16.gmra.mrb[0].mxu0 %v220
    %v326 = vpop.f32.mrb[0].mxu0
    %v327 = vadd.f32 %v242, %v326
    %v328 = vpop.f32.mrb[0].mxu0
    %v329 = vpop.f32.mrb[0].mxu0
    %v330 = vpop.f32.mrb[0].mxu0
    %331 = vdwg.mxu0
    %v332 = vmax.f32 %v327, 0.0
    %v333 = vpack.c.bf16 %v332, %v332
    %v334 = vld [vmem:[#allocation6] sm:$0xf]
    %v335 = vld [vmem:[#allocation6 + $0x4] sm:$0xf]
    %v336 = vld [vmem:[#allocation6 + $0x8] sm:$0xf]
    %v337 = vld [vmem:[#allocation6 + $0xc] sm:$0xf]
    %v338 = vld [vmem:[#allocation6 + $0x10] sm:$0xf]
    %v339 = vld [vmem:[#allocation6 + $0x14] sm:$0xf]
    %v340 = vld [vmem:[#allocation6 + $0x18] sm:$0xf]
    %v341 = vld [vmem:[#allocation6 + $0x1c] sm:$0xf]
    %v342 = vld [vmem:[#allocation6 + $0x20] sm:$0xf]
    %v343 = vld [vmem:[#allocation6 + $0x24] sm:$0xf]
    %v344 = vld [vmem:[#allocation6 + $0x28] sm:$0xf]
    %v345 = vld [vmem:[#allocation6 + $0x2c] sm:$0xf]
    %v346 = vld [vmem:[#allocation6 + $0x30] sm:$0xf]
    %v347 = vld [vmem:[#allocation6 + $0x34] sm:$0xf]
    %v348 = vld [vmem:[#allocation6 + $0x38] sm:$0xf]
    %v349 = vld [vmem:[#allocation6 + $0x3c] sm:$0xf]
    %v350 = vld [vmem:[%s6] sm:$0x1]
    %v352 = vlaneseq
    %v353 = vshrl.u32 %v352, 7
    %v354 = vsub.s32 0, %v353
    %v355 = vrot.slane %v350, %v354
    %v373 = vunpack.c.l.b16 %v334
    %v374 = vunpack.c.l.b16 %v335
    %v375 = vunpack.c.l.b16 %v336
    %v376 = vunpack.c.l.b16 %v337
    %v377 = vunpack.c.l.b16 %v338
    %v378 = vunpack.c.l.b16 %v339
    %v379 = vunpack.c.l.b16 %v340
    %v380 = vunpack.c.l.b16 %v341
    %v381 = vunpack.c.l.b16 %v342
    %v382 = vunpack.c.l.b16 %v343
    %v383 = vunpack.c.l.b16 %v344
    %v384 = vunpack.c.l.b16 %v345
    %v385 = vunpack.c.l.b16 %v346
    %v386 = vunpack.c.l.b16 %v347
    %v387 = vunpack.c.l.b16 %v348
    %v388 = vunpack.c.l.b16 %v349
    %v389 = vpack.c.b16 %v374, %v373
    %v390 = vpack.c.b16 %v376, %v375
    %v391 = vpack.c.b16 %v378, %v377
    %v392 = vpack.c.b16 %v380, %v379
    %v393 = vpack.c.b16 %v382, %v381
    %v394 = vpack.c.b16 %v384, %v383
    %v395 = vpack.c.b16 %v386, %v385
    %v396 = vpack.c.b16 %v388, %v387
    %405 = vmatprep.subr.bf16.mxu0 0
    %406 = vmatpush1.bf16.msra.mxu0 %v389
    %407 = vmatprep.subr.bf16.mxu0 0
    %408 = vmatpush1.bf16.msra.mxu0 %v390
    %409 = vmatprep.subr.bf16.mxu0 0
    %410 = vmatpush1.bf16.msra.mxu0 %v391
    %411 = vmatprep.subr.bf16.mxu0 0
    %412 = vmatpush1.bf16.msra.mxu0 %v392
    %413 = vmatprep.subr.bf16.mxu0 0
    %414 = vmatpush1.bf16.msra.mxu0 %v393
    %415 = vmatprep.subr.bf16.mxu0 0
    %416 = vmatpush1.bf16.msra.mxu0 %v394
    %417 = vmatprep.subr.bf16.mxu0 0
    %418 = vmatpush1.bf16.msra.mxu0 %v395
    %419 = vmatprep.subr.bf16.mxu0 0
    %420 = vmatpush1.bf16.msra.mxu0 %v396
    %421 = vmatprep.subr.bf16.mxu0 0
    %422 = vmatpush1.bf16.msra.mxu0 0
    %423 = vmatprep.subr.bf16.mxu0 0
    %424 = vmatpush1.bf16.msra.mxu0 0
    %425 = vmatprep.subr.bf16.mxu0 0
    %426 = vmatpush1.bf16.msra.mxu0 0
    %427 = vmatprep.subr.bf16.mxu0 0
    %428 = vmatpush1.bf16.msra.mxu0 0
    %429 = vmatprep.subr.bf16.mxu0 0
    %430 = vmatpush1.bf16.msra.mxu0 0
    %431 = vmatprep.subr.bf16.mxu0 0
    %432 = vmatpush1.bf16.msra.mxu0 0
    %433 = vmatprep.subr.bf16.mxu0 0
    %434 = vmatpush1.bf16.msra.mxu0 0
    %435 = vmatprep.subr.bf16.mxu0 0
    %436 = vmatpush1.bf16.msra.mxu0 0
    %437 = vmatprep.mubr.bf16.mxu0 0
    %438 = vmatmul.mubr.bf16.gmra.mrb[0].mxu0 %v333
    %v439 = vpop.f32.mrb[0].mxu0
    %v440 = vadd.f32 %v355, %v439
    %v441 = vpop.f32.mrb[0].mxu0
    %v442 = vpop.f32.mrb[0].mxu0
    %v443 = vpop.f32.mrb[0].mxu0
    %444 = vdwg.mxu0
    %v445 = vmax.f32 %v440, 0.0
    %v446 = vpack.c.bf16 %v445, %v445
    %v447 = vld [vmem:[#allocation7] sm:$0xf]
    %v448 = vld [vmem:[#allocation7 + $0x4] sm:$0xf]
    %v449 = vld [vmem:[#allocation7 + $0x8] sm:$0xf]
    %v450 = vld [vmem:[#allocation7 + $0xc] sm:$0xf]
    %v451 = vld [vmem:[#allocation7 + $0x10] sm:$0xf]
    %v452 = vld [vmem:[#allocation7 + $0x14] sm:$0xf]
    %v453 = vld [vmem:[#allocation7 + $0x18] sm:$0xf]
    %v454 = vld [vmem:[#allocation7 + $0x1c] sm:$0xf]
    %v455 = vld [vmem:[#allocation7 + $0x20] sm:$0xf]
    %v456 = vld [vmem:[#allocation7 + $0x24] sm:$0xf]
    %v457 = vld [vmem:[#allocation7 + $0x28] sm:$0xf]
    %v458 = vld [vmem:[#allocation7 + $0x2c] sm:$0xf]
    %v459 = vld [vmem:[#allocation7 + $0x30] sm:$0xf]
    %v460 = vld [vmem:[#allocation7 + $0x34] sm:$0xf]
    %v461 = vld [vmem:[#allocation7 + $0x38] sm:$0xf]
    %v462 = vld [vmem:[#allocation7 + $0x3c] sm:$0xf]
    %v463 = vld [vmem:[%s8] sm:$0x1]
    %v465 = vlaneseq
    %v466 = vshrl.u32 %v465, 7
    %v467 = vsub.s32 0, %v466
    %v468 = vrot.slane %v463, %v467
    %v486 = vunpack.c.l.b16 %v447
    %v487 = vunpack.c.l.b16 %v448
    %v488 = vunpack.c.l.b16 %v449
    %v489 = vunpack.c.l.b16 %v450
    %v490 = vunpack.c.l.b16 %v451
    %v491 = vunpack.c.l.b16 %v452
    %v492 = vunpack.c.l.b16 %v453
    %v493 = vunpack.c.l.b16 %v454
    %v494 = vunpack.c.l.b16 %v455
    %v495 = vunpack.c.l.b16 %v456
    %v496 = vunpack.c.l.b16 %v457
    %v497 = vunpack.c.l.b16 %v458
    %v498 = vunpack.c.l.b16 %v459
    %v499 = vunpack.c.l.b16 %v460
    %v500 = vunpack.c.l.b16 %v461
    %v501 = vunpack.c.l.b16 %v462
    %v502 = vpack.c.b16 %v487, %v486
    %v503 = vpack.c.b16 %v489, %v488
    %v504 = vpack.c.b16 %v491, %v490
    %v505 = vpack.c.b16 %v493, %v492
    %v506 = vpack.c.b16 %v495, %v494
    %v507 = vpack.c.b16 %v497, %v496
    %v508 = vpack.c.b16 %v499, %v498
    %v509 = vpack.c.b16 %v501, %v500
    %518 = vmatprep.subr.bf16.mxu0 0
    %519 = vmatpush1.bf16.msra.mxu0 %v502
    %520 = vmatprep.subr.bf16.mxu0 0
    %521 = vmatpush1.bf16.msra.mxu0 %v503
    %522 = vmatprep.subr.bf16.mxu0 0
    %523 = vmatpush1.bf16.msra.mxu0 %v504
    %524 = vmatprep.subr.bf16.mxu0 0
    %525 = vmatpush1.bf16.msra.mxu0 %v505
    %526 = vmatprep.subr.bf16.mxu0 0
    %527 = vmatpush1.bf16.msra.mxu0 %v506
    %528 = vmatprep.subr.bf16.mxu0 0
    %529 = vmatpush1.bf16.msra.mxu0 %v507
    %530 = vmatprep.subr.bf16.mxu0 0
    %531 = vmatpush1.bf16.msra.mxu0 %v508
    %532 = vmatprep.subr.bf16.mxu0 0
    %533 = vmatpush1.bf16.msra.mxu0 %v509
    %534 = vmatprep.subr.bf16.mxu0 0
    %535 = vmatpush1.bf16.msra.mxu0 0
    %536 = vmatprep.subr.bf16.mxu0 0
    %537 = vmatpush1.bf16.msra.mxu0 0
    %538 = vmatprep.subr.bf16.mxu0 0
    %539 = vmatpush1.bf16.msra.mxu0 0
    %540 = vmatprep.subr.bf16.mxu0 0
    %541 = vmatpush1.bf16.msra.mxu0 0
    %542 = vmatprep.subr.bf16.mxu0 0
    %543 = vmatpush1.bf16.msra.mxu0 0
    %544 = vmatprep.subr.bf16.mxu0 0
    %545 = vmatpush1.bf16.msra.mxu0 0
    %546 = vmatprep.subr.bf16.mxu0 0
    %547 = vmatpush1.bf16.msra.mxu0 0
    %548 = vmatprep.subr.bf16.mxu0 0
    %549 = vmatpush1.bf16.msra.mxu0 0
    %550 = vmatprep.mubr.bf16.mxu0 0
    %551 = vmatmul.mubr.bf16.gmra.mrb[0].mxu0 %v446
    %v552 = vpop.f32.mrb[0].mxu0
    %v553 = vadd.f32 %v468, %v552
    %v554 = vpop.f32.mrb[0].mxu0
    %v555 = vpop.f32.mrb[0].mxu0
    %v556 = vpop.f32.mrb[0].mxu0
    %557 = vdwg.mxu0
    %v558 = vmax.f32 %v553, 0.0
    %v559 = vpack.c.bf16 %v558, %v558
    %v560 = vld [vmem:[#allocation9] sm:$0xf]
    %v561 = vld [vmem:[#allocation9 + $0x4] sm:$0xf]
    %v562 = vld [vmem:[#allocation9 + $0x8] sm:$0xf]
    %v563 = vld [vmem:[#allocation9 + $0xc] sm:$0xf]
    %v564 = vld [vmem:[#allocation9 + $0x10] sm:$0xf]
    %v565 = vld [vmem:[#allocation9 + $0x14] sm:$0xf]
    %v566 = vld [vmem:[#allocation9 + $0x18] sm:$0xf]
    %v567 = vld [vmem:[#allocation9 + $0x1c] sm:$0xf]
    %v568 = vld [vmem:[#allocation9 + $0x20] sm:$0xf]
    %v569 = vld [vmem:[#allocation9 + $0x24] sm:$0xf]
    %v570 = vld [vmem:[#allocation9 + $0x28] sm:$0xf]
    %v571 = vld [vmem:[#allocation9 + $0x2c] sm:$0xf]
    %v572 = vld [vmem:[#allocation9 + $0x30] sm:$0xf]
    %v573 = vld [vmem:[#allocation9 + $0x34] sm:$0xf]
    %v574 = vld [vmem:[#allocation9 + $0x38] sm:$0xf]
    %v575 = vld [vmem:[#allocation9 + $0x3c] sm:$0xf]
    %v576 = vld [vmem:[%s10] sm:$0x1]
    %v578 = vlaneseq
    %v579 = vshrl.u32 %v578, 7
    %v580 = vsub.s32 0, %v579
    %v581 = vrot.slane %v576, %v580
    %v599 = vunpack.c.l.b16 %v560
    %v600 = vunpack.c.l.b16 %v561
    %v601 = vunpack.c.l.b16 %v562
    %v602 = vunpack.c.l.b16 %v563
    %v603 = vunpack.c.l.b16 %v564
    %v604 = vunpack.c.l.b16 %v565
    %v605 = vunpack.c.l.b16 %v566
    %v606 = vunpack.c.l.b16 %v567
    %v607 = vunpack.c.l.b16 %v568
    %v608 = vunpack.c.l.b16 %v569
    %v609 = vunpack.c.l.b16 %v570
    %v610 = vunpack.c.l.b16 %v571
    %v611 = vunpack.c.l.b16 %v572
    %v612 = vunpack.c.l.b16 %v573
    %v613 = vunpack.c.l.b16 %v574
    %v614 = vunpack.c.l.b16 %v575
    %v615 = vpack.c.b16 %v600, %v599
    %v616 = vpack.c.b16 %v602, %v601
    %v617 = vpack.c.b16 %v604, %v603
    %v618 = vpack.c.b16 %v606, %v605
    %v619 = vpack.c.b16 %v608, %v607
    %v620 = vpack.c.b16 %v610, %v609
    %v621 = vpack.c.b16 %v612, %v611
    %v622 = vpack.c.b16 %v614, %v613
    %631 = vmatprep.subr.bf16.mxu0 0
    %632 = vmatpush1.bf16.msra.mxu0 %v615
    %633 = vmatprep.subr.bf16.mxu0 0
    %634 = vmatpush1.bf16.msra.mxu0 %v616
    %635 = vmatprep.subr.bf16.mxu0 0
    %636 = vmatpush1.bf16.msra.mxu0 %v617
    %637 = vmatprep.subr.bf16.mxu0 0
    %638 = vmatpush1.bf16.msra.mxu0 %v618
    %639 = vmatprep.subr.bf16.mxu0 0
    %640 = vmatpush1.bf16.msra.mxu0 %v619
    %641 = vmatprep.subr.bf16.mxu0 0
    %642 = vmatpush1.bf16.msra.mxu0 %v620
    %643 = vmatprep.subr.bf16.mxu0 0
    %644 = vmatpush1.bf16.msra.mxu0 %v621
    %645 = vmatprep.subr.bf16.mxu0 0
    %646 = vmatpush1.bf16.msra.mxu0 %v622
    %647 = vmatprep.subr.bf16.mxu0 0
    %648 = vmatpush1.bf16.msra.mxu0 0
    %649 = vmatprep.subr.bf16.mxu0 0
    %650 = vmatpush1.bf16.msra.mxu0 0
    %651 = vmatprep.subr.bf16.mxu0 0
    %652 = vmatpush1.bf16.msra.mxu0 0
    %653 = vmatprep.subr.bf16.mxu0 0
    %654 = vmatpush1.bf16.msra.mxu0 0
    %655 = vmatprep.subr.bf16.mxu0 0
    %656 = vmatpush1.bf16.msra.mxu0 0
    %657 = vmatprep.subr.bf16.mxu0 0
    %658 = vmatpush1.bf16.msra.mxu0 0
    %659 = vmatprep.subr.bf16.mxu0 0
    %660 = vmatpush1.bf16.msra.mxu0 0
    %661 = vmatprep.subr.bf16.mxu0 0
    %662 = vmatpush1.bf16.msra.mxu0 0
    %663 = vmatprep.mubr.bf16.mxu0 0
    %664 = vmatmul.mubr.bf16.gmra.mrb[0].mxu0 %v559
    %v665 = vpop.f32.mrb[0].mxu0
    %v666 = vadd.f32 %v581, %v665
    %v667 = vpop.f32.mrb[0].mxu0
    %v668 = vpop.f32.mrb[0].mxu0
    %v669 = vpop.f32.mrb[0].mxu0
    %670 = vdwg.mxu0
    %v671 = vlaneseq
    %v672 = vand.u32 %v671, 127
    %vm673 = vcmp.lt.s32.totalorder %v672, 28
    %v674 = vsel %vm673, %v666, -1e+30
    %675 = vmax.xlane.f32.xlu0 %v674
    %v676 = vpop.xlane.xlu0 %675
    %v677 = vsub.f32 %v674, %v676
    %v678 = vmul.f32 %v677, 1.442695
    %v679 = vpow.pop %v678
    %680 = vadd.xlane.f32.xlu0 %v679
    %v681 = vpop.xlane.xlu0 %680
    %v682 = vlog2.pop %v681
    %v683 = vmul.f32 %v682, 0.6931472
    %v684 = vsub.f32 %v677, %v683
    %vm685 = vcmp.eq.s32.totalorder %v672, 28
    %v686 = vsel %vm685, %v666, 0.0
    %v687 = vsel %vm673, %v684, %v686
    %688 = vst [vmem:[%s11] sm:$0xff] %v687
    %v689 = vld [vmem:[%s0 + $0x4] sm:$0xf]
    %v690 = vld [vmem:[#allocation2] sm:$0xf]
    %v691 = vld [vmem:[#allocation2 + $0x4] sm:$0xf]
    %v692 = vld [vmem:[#allocation2 + $0x8] sm:$0xf]
    %v693 = vld [vmem:[#allocation2 + $0xc] sm:$0xf]
    %v694 = vld [vmem:[#allocation2 + $0x10] sm:$0xf]
    %v695 = vld [vmem:[#allocation2 + $0x14] sm:$0xf]
    %v696 = vld [vmem:[#allocation2 + $0x18] sm:$0xf]
    %v697 = vld [vmem:[#allocation2 + $0x1c] sm:$0xf]
    %v698 = vld [vmem:[#allocation2 + $0x20] sm:$0xf]
    %v699 = vld [vmem:[#allocation2 + $0x24] sm:$0xf]
    %v700 = vld [vmem:[#allocation2 + $0x28] sm:$0xf]
    %v701 = vld [vmem:[#allocation2 + $0x2c] sm:$0xf]
    %v702 = vld [vmem:[#allocation2 + $0x30] sm:$0xf]
    %v703 = vld [vmem:[#allocation2 + $0x34] sm:$0xf]
    %v704 = vld [vmem:[#allocation2 + $0x38] sm:$0xf]
    %v705 = vld [vmem:[#allocation2 + $0x3c] sm:$0xf]
    %v706 = vld [vmem:[%s2] sm:$0x1]
    %v708 = vlaneseq
    %v709 = vshrl.u32 %v708, 7
    %v710 = vsub.s32 0, %v709
    %v711 = vrot.slane %v706, %v710
    %v729 = vunpack.c.l.b16 %v690
    %v730 = vunpack.c.l.b16 %v691
    %v731 = vunpack.c.l.b16 %v692
    %v732 = vunpack.c.l.b16 %v693
    %v733 = vunpack.c.l.b16 %v694
    %v734 = vunpack.c.l.b16 %v695
    %v735 = vunpack.c.l.b16 %v696
    %v736 = vunpack.c.l.b16 %v697
    %v737 = vunpack.c.l.b16 %v698
    %v738 = vunpack.c.l.b16 %v699
    %v739 = vunpack.c.l.b16 %v700
    %v740 = vunpack.c.l.b16 %v701
    %v741 = vunpack.c.l.b16 %v702
    %v742 = vunpack.c.l.b16 %v703
    %v743 = vunpack.c.l.b16 %v704
    %v744 = vunpack.c.l.b16 %v705
    %v745 = vpack.c.b16 %v730, %v729
    %v746 = vpack.c.b16 %v732, %v731
    %v747 = vpack.c.b16 %v734, %v733
    %v748 = vpack.c.b16 %v736, %v735
    %v749 = vpack.c.b16 %v738, %v737
    %v750 = vpack.c.b16 %v740, %v739
    %v751 = vpack.c.b16 %v742, %v741
    %v752 = vpack.c.b16 %v744, %v743
    %761 = vmatprep.subr.bf16.mxu0 0
    %762 = vmatpush1.bf16.msra.mxu0 %v745
    %763 = vmatprep.subr.bf16.mxu0 0
    %764 = vmatpush1.bf16.msra.mxu0 %v746
    %765 = vmatprep.subr.bf16.mxu0 0
    %766 = vmatpush1.bf16.msra.mxu0 %v747
    %767 = vmatprep.subr.bf16.mxu0 0
    %768 = vmatpush1.bf16.msra.mxu0 %v748
    %769 = vmatprep.subr.bf16.mxu0 0
    %770 = vmatpush1.bf16.msra.mxu0 %v749
    %771 = vmatprep.subr.bf16.mxu0 0
    %772 = vmatpush1.bf16.msra.mxu0 %v750
    %773 = vmatprep.subr.bf16.mxu0 0
    %774 = vmatpush1.bf16.msra.mxu0 %v751
    %775 = vmatprep.subr.bf16.mxu0 0
    %776 = vmatpush1.bf16.msra.mxu0 %v752
    %777 = vmatprep.subr.bf16.mxu0 0
    %778 = vmatpush1.bf16.msra.mxu0 0
    %779 = vmatprep.subr.bf16.mxu0 0
    %780 = vmatpush1.bf16.msra.mxu0 0
    %781 = vmatprep.subr.bf16.mxu0 0
    %782 = vmatpush1.bf16.msra.mxu0 0
    %783 = vmatprep.subr.bf16.mxu0 0
    %784 = vmatpush1.bf16.msra.mxu0 0
    %785 = vmatprep.subr.bf16.mxu0 0
    %786 = vmatpush1.bf16.msra.mxu0 0
    %787 = vmatprep.subr.bf16.mxu0 0
    %788 = vmatpush1.bf16.msra.mxu0 0
    %789 = vmatprep.subr.bf16.mxu0 0
    %790 = vmatpush1.bf16.msra.mxu0 0
    %791 = vmatprep.subr.bf16.mxu0 0
    %792 = vmatpush1.bf16.msra.mxu0 0
    %793 = vmatprep.mubr.bf16.mxu0 0
    %794 = vmatmul.mubr.bf16.gmra.mrb[0].mxu0 %v689
    %v795 = vpop.f32.mrb[0].mxu0
    %v796 = vadd.f32 %v711, %v795
    %v797 = vpop.f32.mrb[0].mxu0
    %v798 = vpop.f32.mrb[0].mxu0
    %v799 = vpop.f32.mrb[0].mxu0
    %800 = vdwg.mxu0
    %v801 = vmax.f32 %v796, 0.0
    %v802 = vpack.c.bf16 %v801, %v801
    %v803 = vld [vmem:[#allocation4] sm:$0xf]
    %v804 = vld [vmem:[#allocation4 + $0x4] sm:$0xf]
    %v805 = vld [vmem:[#allocation4 + $0x8] sm:$0xf]
    %v806 = vld [vmem:[#allocation4 + $0xc] sm:$0xf]
    %v807 = vld [vmem:[#allocation4 + $0x10] sm:$0xf]
    %v808 = vld [vmem:[#allocation4 + $0x14] sm:$0xf]
    %v809 = vld [vmem:[#allocation4 + $0x18] sm:$0xf]
    %v810 = vld [vmem:[#allocation4 + $0x1c] sm:$0xf]
    %v811 = vld [vmem:[#allocation4 + $0x20] sm:$0xf]
    %v812 = vld [vmem:[#allocation4 + $0x24] sm:$0xf]
    %v813 = vld [vmem:[#allocation4 + $0x28] sm:$0xf]
    %v814 = vld [vmem:[#allocation4 + $0x2c] sm:$0xf]
    %v815 = vld [vmem:[#allocation4 + $0x30] sm:$0xf]
    %v816 = vld [vmem:[#allocation4 + $0x34] sm:$0xf]
    %v817 = vld [vmem:[#allocation4 + $0x38] sm:$0xf]
    %v818 = vld [vmem:[#allocation4 + $0x3c] sm:$0xf]
    %v819 = vld [vmem:[%s4] sm:$0x1]
    %v821 = vlaneseq
    %v822 = vshrl.u32 %v821, 7
    %v823 = vsub.s32 0, %v822
    %v824 = vrot.slane %v819, %v823
    %v842 = vunpack.c.l.b16 %v803
    %v843 = vunpack.c.l.b16 %v804
    %v844 = vunpack.c.l.b16 %v805
    %v845 = vunpack.c.l.b16 %v806
    %v846 = vunpack.c.l.b16 %v807
    %v847 = vunpack.c.l.b16 %v808
    %v848 = vunpack.c.l.b16 %v809
    %v849 = vunpack.c.l.b16 %v810
    %v850 = vunpack.c.l.b16 %v811
    %v851 = vunpack.c.l.b16 %v812
    %v852 = vunpack.c.l.b16 %v813
    %v853 = vunpack.c.l.b16 %v814
    %v854 = vunpack.c.l.b16 %v815
    %v855 = vunpack.c.l.b16 %v816
    %v856 = vunpack.c.l.b16 %v817
    %v857 = vunpack.c.l.b16 %v818
    %v858 = vpack.c.b16 %v843, %v842
    %v859 = vpack.c.b16 %v845, %v844
    %v860 = vpack.c.b16 %v847, %v846
    %v861 = vpack.c.b16 %v849, %v848
    %v862 = vpack.c.b16 %v851, %v850
    %v863 = vpack.c.b16 %v853, %v852
    %v864 = vpack.c.b16 %v855, %v854
    %v865 = vpack.c.b16 %v857, %v856
    %874 = vmatprep.subr.bf16.mxu0 0
    %875 = vmatpush1.bf16.msra.mxu0 %v858
    %876 = vmatprep.subr.bf16.mxu0 0
    %877 = vmatpush1.bf16.msra.mxu0 %v859
    %878 = vmatprep.subr.bf16.mxu0 0
    %879 = vmatpush1.bf16.msra.mxu0 %v860
    %880 = vmatprep.subr.bf16.mxu0 0
    %881 = vmatpush1.bf16.msra.mxu0 %v861
    %882 = vmatprep.subr.bf16.mxu0 0
    %883 = vmatpush1.bf16.msra.mxu0 %v862
    %884 = vmatprep.subr.bf16.mxu0 0
    %885 = vmatpush1.bf16.msra.mxu0 %v863
    %886 = vmatprep.subr.bf16.mxu0 0
    %887 = vmatpush1.bf16.msra.mxu0 %v864
    %888 = vmatprep.subr.bf16.mxu0 0
    %889 = vmatpush1.bf16.msra.mxu0 %v865
    %890 = vmatprep.subr.bf16.mxu0 0
    %891 = vmatpush1.bf16.msra.mxu0 0
    %892 = vmatprep.subr.bf16.mxu0 0
    %893 = vmatpush1.bf16.msra.mxu0 0
    %894 = vmatprep.subr.bf16.mxu0 0
    %895 = vmatpush1.bf16.msra.mxu0 0
    %896 = vmatprep.subr.bf16.mxu0 0
    %897 = vmatpush1.bf16.msra.mxu0 0
    %898 = vmatprep.subr.bf16.mxu0 0
    %899 = vmatpush1.bf16.msra.mxu0 0
    %900 = vmatprep.subr.bf16.mxu0 0
    %901 = vmatpush1.bf16.msra.mxu0 0
    %902 = vmatprep.subr.bf16.mxu0 0
    %903 = vmatpush1.bf16.msra.mxu0 0
    %904 = vmatprep.subr.bf16.mxu0 0
    %905 = vmatpush1.bf16.msra.mxu0 0
    %906 = vmatprep.mubr.bf16.mxu0 0
    %907 = vmatmul.mubr.bf16.gmra.mrb[0].mxu0 %v802
    %v908 = vpop.f32.mrb[0].mxu0
    %v909 = vadd.f32 %v824, %v908
    %v910 = vpop.f32.mrb[0].mxu0
    %v911 = vpop.f32.mrb[0].mxu0
    %v912 = vpop.f32.mrb[0].mxu0
    %913 = vdwg.mxu0
    %v914 = vmax.f32 %v909, 0.0
    %v915 = vpack.c.bf16 %v914, %v914
    %v916 = vld [vmem:[#allocation6] sm:$0xf]
    %v917 = vld [vmem:[#allocation6 + $0x4] sm:$0xf]
    %v918 = vld [vmem:[#allocation6 + $0x8] sm:$0xf]
    %v919 = vld [vmem:[#allocation6 + $0xc] sm:$0xf]
    %v920 = vld [vmem:[#allocation6 + $0x10] sm:$0xf]
    %v921 = vld [vmem:[#allocation6 + $0x14] sm:$0xf]
    %v922 = vld [vmem:[#allocation6 + $0x18] sm:$0xf]
    %v923 = vld [vmem:[#allocation6 + $0x1c] sm:$0xf]
    %v924 = vld [vmem:[#allocation6 + $0x20] sm:$0xf]
    %v925 = vld [vmem:[#allocation6 + $0x24] sm:$0xf]
    %v926 = vld [vmem:[#allocation6 + $0x28] sm:$0xf]
    %v927 = vld [vmem:[#allocation6 + $0x2c] sm:$0xf]
    %v928 = vld [vmem:[#allocation6 + $0x30] sm:$0xf]
    %v929 = vld [vmem:[#allocation6 + $0x34] sm:$0xf]
    %v930 = vld [vmem:[#allocation6 + $0x38] sm:$0xf]
    %v931 = vld [vmem:[#allocation6 + $0x3c] sm:$0xf]
    %v932 = vld [vmem:[%s6] sm:$0x1]
    %v934 = vlaneseq
    %v935 = vshrl.u32 %v934, 7
    %v936 = vsub.s32 0, %v935
    %v937 = vrot.slane %v932, %v936
    %v955 = vunpack.c.l.b16 %v916
    %v956 = vunpack.c.l.b16 %v917
    %v957 = vunpack.c.l.b16 %v918
    %v958 = vunpack.c.l.b16 %v919
    %v959 = vunpack.c.l.b16 %v920
    %v960 = vunpack.c.l.b16 %v921
    %v961 = vunpack.c.l.b16 %v922
    %v962 = vunpack.c.l.b16 %v923
    %v963 = vunpack.c.l.b16 %v924
    %v964 = vunpack.c.l.b16 %v925
    %v965 = vunpack.c.l.b16 %v926
    %v966 = vunpack.c.l.b16 %v927
    %v967 = vunpack.c.l.b16 %v928
    %v968 = vunpack.c.l.b16 %v929
    %v969 = vunpack.c.l.b16 %v930
    %v970 = vunpack.c.l.b16 %v931
    %v971 = vpack.c.b16 %v956, %v955
    %v972 = vpack.c.b16 %v958, %v957
    %v973 = vpack.c.b16 %v960, %v959
    %v974 = vpack.c.b16 %v962, %v961
    %v975 = vpack.c.b16 %v964, %v963
    %v976 = vpack.c.b16 %v966, %v965
    %v977 = vpack.c.b16 %v968, %v967
    %v978 = vpack.c.b16 %v970, %v969
    %987 = vmatprep.subr.bf16.mxu0 0
    %988 = vmatpush1.bf16.msra.mxu0 %v971
    %989 = vmatprep.subr.bf16.mxu0 0
    %990 = vmatpush1.bf16.msra.mxu0 %v972
    %991 = vmatprep.subr.bf16.mxu0 0
    %992 = vmatpush1.bf16.msra.mxu0 %v973
    %993 = vmatprep.subr.bf16.mxu0 0
    %994 = vmatpush1.bf16.msra.mxu0 %v974
    %995 = vmatprep.subr.bf16.mxu0 0
    %996 = vmatpush1.bf16.msra.mxu0 %v975
    %997 = vmatprep.subr.bf16.mxu0 0
    %998 = vmatpush1.bf16.msra.mxu0 %v976
    %999 = vmatprep.subr.bf16.mxu0 0
    %1000 = vmatpush1.bf16.msra.mxu0 %v977
    %1001 = vmatprep.subr.bf16.mxu0 0
    %1002 = vmatpush1.bf16.msra.mxu0 %v978
    %1003 = vmatprep.subr.bf16.mxu0 0
    %1004 = vmatpush1.bf16.msra.mxu0 0
    %1005 = vmatprep.subr.bf16.mxu0 0
    %1006 = vmatpush1.bf16.msra.mxu0 0
    %1007 = vmatprep.subr.bf16.mxu0 0
    %1008 = vmatpush1.bf16.msra.mxu0 0
    %1009 = vmatprep.subr.bf16.mxu0 0
    %1010 = vmatpush1.bf16.msra.mxu0 0
    %1011 = vmatprep.subr.bf16.mxu0 0
    %1012 = vmatpush1.bf16.msra.mxu0 0
    %1013 = vmatprep.subr.bf16.mxu0 0
    %1014 = vmatpush1.bf16.msra.mxu0 0
    %1015 = vmatprep.subr.bf16.mxu0 0
    %1016 = vmatpush1.bf16.msra.mxu0 0
    %1017 = vmatprep.subr.bf16.mxu0 0
    %1018 = vmatpush1.bf16.msra.mxu0 0
    %1019 = vmatprep.mubr.bf16.mxu0 0
    %1020 = vmatmul.mubr.bf16.gmra.mrb[0].mxu0 %v915
    %v1021 = vpop.f32.mrb[0].mxu0
    %v1022 = vadd.f32 %v937, %v1021
    %v1023 = vpop.f32.mrb[0].mxu0
    %v1024 = vpop.f32.mrb[0].mxu0
    %v1025 = vpop.f32.mrb[0].mxu0
    %1026 = vdwg.mxu0
    %v1027 = vmax.f32 %v1022, 0.0
    %v1028 = vpack.c.bf16 %v1027, %v1027
    %v1029 = vld [vmem:[#allocation7] sm:$0xf]
    %v1030 = vld [vmem:[#allocation7 + $0x4] sm:$0xf]
    %v1031 = vld [vmem:[#allocation7 + $0x8] sm:$0xf]
    %v1032 = vld [vmem:[#allocation7 + $0xc] sm:$0xf]
    %v1033 = vld [vmem:[#allocation7 + $0x10] sm:$0xf]
    %v1034 = vld [vmem:[#allocation7 + $0x14] sm:$0xf]
    %v1035 = vld [vmem:[#allocation7 + $0x18] sm:$0xf]
    %v1036 = vld [vmem:[#allocation7 + $0x1c] sm:$0xf]
    %v1037 = vld [vmem:[#allocation7 + $0x20] sm:$0xf]
    %v1038 = vld [vmem:[#allocation7 + $0x24] sm:$0xf]
    %v1039 = vld [vmem:[#allocation7 + $0x28] sm:$0xf]
    %v1040 = vld [vmem:[#allocation7 + $0x2c] sm:$0xf]
    %v1041 = vld [vmem:[#allocation7 + $0x30] sm:$0xf]
    %v1042 = vld [vmem:[#allocation7 + $0x34] sm:$0xf]
    %v1043 = vld [vmem:[#allocation7 + $0x38] sm:$0xf]
    %v1044 = vld [vmem:[#allocation7 + $0x3c] sm:$0xf]
    %v1045 = vld [vmem:[%s8] sm:$0x1]
    %v1047 = vlaneseq
    %v1048 = vshrl.u32 %v1047, 7
    %v1049 = vsub.s32 0, %v1048
    %v1050 = vrot.slane %v1045, %v1049
    %v1068 = vunpack.c.l.b16 %v1029
    %v1069 = vunpack.c.l.b16 %v1030
    %v1070 = vunpack.c.l.b16 %v1031
    %v1071 = vunpack.c.l.b16 %v1032
    %v1072 = vunpack.c.l.b16 %v1033
    %v1073 = vunpack.c.l.b16 %v1034
    %v1074 = vunpack.c.l.b16 %v1035
    %v1075 = vunpack.c.l.b16 %v1036
    %v1076 = vunpack.c.l.b16 %v1037
    %v1077 = vunpack.c.l.b16 %v1038
    %v1078 = vunpack.c.l.b16 %v1039
    %v1079 = vunpack.c.l.b16 %v1040
    %v1080 = vunpack.c.l.b16 %v1041
    %v1081 = vunpack.c.l.b16 %v1042
    %v1082 = vunpack.c.l.b16 %v1043
    %v1083 = vunpack.c.l.b16 %v1044
    %v1084 = vpack.c.b16 %v1069, %v1068
    %v1085 = vpack.c.b16 %v1071, %v1070
    %v1086 = vpack.c.b16 %v1073, %v1072
    %v1087 = vpack.c.b16 %v1075, %v1074
    %v1088 = vpack.c.b16 %v1077, %v1076
    %v1089 = vpack.c.b16 %v1079, %v1078
    %v1090 = vpack.c.b16 %v1081, %v1080
    %v1091 = vpack.c.b16 %v1083, %v1082
    %1100 = vmatprep.subr.bf16.mxu0 0
    %1101 = vmatpush1.bf16.msra.mxu0 %v1084
    %1102 = vmatprep.subr.bf16.mxu0 0
    %1103 = vmatpush1.bf16.msra.mxu0 %v1085
    %1104 = vmatprep.subr.bf16.mxu0 0
    %1105 = vmatpush1.bf16.msra.mxu0 %v1086
    %1106 = vmatprep.subr.bf16.mxu0 0
    %1107 = vmatpush1.bf16.msra.mxu0 %v1087
    %1108 = vmatprep.subr.bf16.mxu0 0
    %1109 = vmatpush1.bf16.msra.mxu0 %v1088
    %1110 = vmatprep.subr.bf16.mxu0 0
    %1111 = vmatpush1.bf16.msra.mxu0 %v1089
    %1112 = vmatprep.subr.bf16.mxu0 0
    %1113 = vmatpush1.bf16.msra.mxu0 %v1090
    %1114 = vmatprep.subr.bf16.mxu0 0
    %1115 = vmatpush1.bf16.msra.mxu0 %v1091
    %1116 = vmatprep.subr.bf16.mxu0 0
    %1117 = vmatpush1.bf16.msra.mxu0 0
    %1118 = vmatprep.subr.bf16.mxu0 0
    %1119 = vmatpush1.bf16.msra.mxu0 0
    %1120 = vmatprep.subr.bf16.mxu0 0
    %1121 = vmatpush1.bf16.msra.mxu0 0
    %1122 = vmatprep.subr.bf16.mxu0 0
    %1123 = vmatpush1.bf16.msra.mxu0 0
    %1124 = vmatprep.subr.bf16.mxu0 0
    %1125 = vmatpush1.bf16.msra.mxu0 0
    %1126 = vmatprep.subr.bf16.mxu0 0
    %1127 = vmatpush1.bf16.msra.mxu0 0
    %1128 = vmatprep.subr.bf16.mxu0 0
    %1129 = vmatpush1.bf16.msra.mxu0 0
    %1130 = vmatprep.subr.bf16.mxu0 0
    %1131 = vmatpush1.bf16.msra.mxu0 0
    %1132 = vmatprep.mubr.bf16.mxu0 0
    %1133 = vmatmul.mubr.bf16.gmra.mrb[0].mxu0 %v1028
    %v1134 = vpop.f32.mrb[0].mxu0
    %v1135 = vadd.f32 %v1050, %v1134
    %v1136 = vpop.f32.mrb[0].mxu0
    %v1137 = vpop.f32.mrb[0].mxu0
    %v1138 = vpop.f32.mrb[0].mxu0
    %1139 = vdwg.mxu0
    %v1140 = vmax.f32 %v1135, 0.0
    %v1141 = vpack.c.bf16 %v1140, %v1140
    %v1142 = vld [vmem:[#allocation9] sm:$0xf]
    %v1143 = vld [vmem:[#allocation9 + $0x4] sm:$0xf]
    %v1144 = vld [vmem:[#allocation9 + $0x8] sm:$0xf]
    %v1145 = vld [vmem:[#allocation9 + $0xc] sm:$0xf]
    %v1146 = vld [vmem:[#allocation9 + $0x10] sm:$0xf]
    %v1147 = vld [vmem:[#allocation9 + $0x14] sm:$0xf]
    %v1148 = vld [vmem:[#allocation9 + $0x18] sm:$0xf]
    %v1149 = vld [vmem:[#allocation9 + $0x1c] sm:$0xf]
    %v1150 = vld [vmem:[#allocation9 + $0x20] sm:$0xf]
    %v1151 = vld [vmem:[#allocation9 + $0x24] sm:$0xf]
    %v1152 = vld [vmem:[#allocation9 + $0x28] sm:$0xf]
    %v1153 = vld [vmem:[#allocation9 + $0x2c] sm:$0xf]
    %v1154 = vld [vmem:[#allocation9 + $0x30] sm:$0xf]
    %v1155 = vld [vmem:[#allocation9 + $0x34] sm:$0xf]
    %v1156 = vld [vmem:[#allocation9 + $0x38] sm:$0xf]
    %v1157 = vld [vmem:[#allocation9 + $0x3c] sm:$0xf]
    %v1158 = vld [vmem:[%s10] sm:$0x1]
    %v1160 = vlaneseq
    %v1161 = vshrl.u32 %v1160, 7
    %v1162 = vsub.s32 0, %v1161
    %v1163 = vrot.slane %v1158, %v1162
    %v1181 = vunpack.c.l.b16 %v1142
    %v1182 = vunpack.c.l.b16 %v1143
    %v1183 = vunpack.c.l.b16 %v1144
    %v1184 = vunpack.c.l.b16 %v1145
    %v1185 = vunpack.c.l.b16 %v1146
    %v1186 = vunpack.c.l.b16 %v1147
    %v1187 = vunpack.c.l.b16 %v1148
    %v1188 = vunpack.c.l.b16 %v1149
    %v1189 = vunpack.c.l.b16 %v1150
    %v1190 = vunpack.c.l.b16 %v1151
    %v1191 = vunpack.c.l.b16 %v1152
    %v1192 = vunpack.c.l.b16 %v1153
    %v1193 = vunpack.c.l.b16 %v1154
    %v1194 = vunpack.c.l.b16 %v1155
    %v1195 = vunpack.c.l.b16 %v1156
    %v1196 = vunpack.c.l.b16 %v1157
    %v1197 = vpack.c.b16 %v1182, %v1181
    %v1198 = vpack.c.b16 %v1184, %v1183
    %v1199 = vpack.c.b16 %v1186, %v1185
    %v1200 = vpack.c.b16 %v1188, %v1187
    %v1201 = vpack.c.b16 %v1190, %v1189
    %v1202 = vpack.c.b16 %v1192, %v1191
    %v1203 = vpack.c.b16 %v1194, %v1193
    %v1204 = vpack.c.b16 %v1196, %v1195
    %1213 = vmatprep.subr.bf16.mxu0 0
    %1214 = vmatpush1.bf16.msra.mxu0 %v1197
    %1215 = vmatprep.subr.bf16.mxu0 0
    %1216 = vmatpush1.bf16.msra.mxu0 %v1198
    %1217 = vmatprep.subr.bf16.mxu0 0
    %1218 = vmatpush1.bf16.msra.mxu0 %v1199
    %1219 = vmatprep.subr.bf16.mxu0 0
    %1220 = vmatpush1.bf16.msra.mxu0 %v1200
    %1221 = vmatprep.subr.bf16.mxu0 0
    %1222 = vmatpush1.bf16.msra.mxu0 %v1201
    %1223 = vmatprep.subr.bf16.mxu0 0
    %1224 = vmatpush1.bf16.msra.mxu0 %v1202
    %1225 = vmatprep.subr.bf16.mxu0 0
    %1226 = vmatpush1.bf16.msra.mxu0 %v1203
    %1227 = vmatprep.subr.bf16.mxu0 0
    %1228 = vmatpush1.bf16.msra.mxu0 %v1204
    %1229 = vmatprep.subr.bf16.mxu0 0
    %1230 = vmatpush1.bf16.msra.mxu0 0
    %1231 = vmatprep.subr.bf16.mxu0 0
    %1232 = vmatpush1.bf16.msra.mxu0 0
    %1233 = vmatprep.subr.bf16.mxu0 0
    %1234 = vmatpush1.bf16.msra.mxu0 0
    %1235 = vmatprep.subr.bf16.mxu0 0
    %1236 = vmatpush1.bf16.msra.mxu0 0
    %1237 = vmatprep.subr.bf16.mxu0 0
    %1238 = vmatpush1.bf16.msra.mxu0 0
    %1239 = vmatprep.subr.bf16.mxu0 0
    %1240 = vmatpush1.bf16.msra.mxu0 0
    %1241 = vmatprep.subr.bf16.mxu0 0
    %1242 = vmatpush1.bf16.msra.mxu0 0
    %1243 = vmatprep.subr.bf16.mxu0 0
    %1244 = vmatpush1.bf16.msra.mxu0 0
    %1245 = vmatprep.mubr.bf16.mxu0 0
    %1246 = vmatmul.mubr.bf16.gmra.mrb[0].mxu0 %v1141
    %v1247 = vpop.f32.mrb[0].mxu0
    %v1248 = vadd.f32 %v1163, %v1247
    %v1249 = vpop.f32.mrb[0].mxu0
    %v1250 = vpop.f32.mrb[0].mxu0
    %v1251 = vpop.f32.mrb[0].mxu0
    %1252 = vdwg.mxu0
    %v1253 = vsel %vm673, %v1248, -1e+30
    %1254 = vmax.xlane.f32.xlu0 %v1253
    %v1255 = vpop.xlane.xlu0 %1254
    %v1256 = vsub.f32 %v1253, %v1255
    %v1257 = vmul.f32 %v1256, 1.442695
    %v1258 = vpow.pop %v1257
    %1259 = vadd.xlane.f32.xlu0 %v1258
    %v1260 = vpop.xlane.xlu0 %1259
    %v1261 = vlog2.pop %v1260
    %v1262 = vmul.f32 %v1261, 0.6931472
    %v1263 = vsub.f32 %v1256, %v1262
    %v1264 = vsel %vm685, %v1248, 0.0
    %v1265 = vsel %vm673, %v1263, %v1264
    %1266 = vst [vmem:[%s11 + $0x8] sm:$0xff] %v1265
    // Predicated region
    $region66: #{hexapawn_forward.1} parent=1 // pred_check
      _
    $region67: #{hexapawn_forward.1} parent=1 // pred_check_branch
      %1268 = sbr.rel (0) target = $region69
    $region68: #{hexapawn_forward.1} parent=1 // pred_region
      _
    $region69: #{hexapawn_forward.1} parent=1 // pred_fallthru
      _
    // Predicated region
    $region70: #{hexapawn_forward.1} parent=1 // pred_check
      _
    $region71: #{hexapawn_forward.1} parent=1 // pred_check_branch
      %1270 = sbr.rel (0) target = $region73
    $region72: #{hexapawn_forward.1} parent=1 // pred_region
      _
    $region73: #{hexapawn_forward.1} parent=1 // pred_fallthru
      _
    %1271 = vsyncpa [#allocation3], 1
    %1272 = vsyncpa [#allocation5], 1
    %1273 = vsyncpa [#allocation8], 1

</llo_original>
